<compile_context>
chip_gen: v5e
topology: v5e:2x2
jax: 0.10.0
libtpu: 0.0.40
codegen_flags: <defaults>
</compile_context>

<pallas_src>
import jax
import jax.numpy as jnp
from jax.experimental import pallas as pl
from jax.experimental.pallas import tpu as pltpu


def gru_decoder_kernel(ids_ref, emb_ref, h0_ref, wi_ref, wh_ref, bias_ref,
                       wlin_ref, blin_ref, y_ref, hs_ref):
    """Whole decoder forward in one invocation (everything resident in VMEM).

    ids_ref  : (L*NP, 1)  int32 token ids, time-major rows (row t*NP + n)
    emb_ref  : (VOCAB, E) embedding table
    h0_ref   : (NP, HP)   initial hidden state (batch/hidden padded to 8/128)
    wi_ref   : (E, 3*HP)  fused input weights, one 128-lane group per gate [r|z|n]
    wh_ref   : (HP, 3*HP) fused hidden weights, same layout
    bias_ref : (2, 3*HP)  row0 = [b_ir+b_hr | b_iz+b_hz | b_in], row1 = [0|0|b_hn]
    wlin_ref : (HP, V)    output Linear weight^T (rows >= H are zero)
    blin_ref : (1, V)     output Linear bias
    y_ref    : (L*NP, V)  all logits (single store)
    hs_ref   : (NP, HP)   final hidden state
    """
    LN = ids_ref.shape[0]
    NP, HP = h0_ref.shape
    L = LN // NP
    VOCAB = emb_ref.shape[0]
    G = HP                                                   # per-gate lane-group width

    # ---- fused embedding gather: one-hot matmul on the MXU ----
    ids = ids_ref[...]                                       # (LN, 1) int32
    vocab_iota = jax.lax.broadcasted_iota(jnp.int32, (LN, VOCAB), 1)
    onehot = (vocab_iota == ids).astype(jnp.float32)         # (LN, VOCAB)
    x_all = jnp.dot(onehot, emb_ref[...],
                    preferred_element_type=jnp.float32)      # (LN, E)

    # ---- hoisted input projection: one fused matmul, foldable biases added once ----
    gi_all = (jnp.dot(x_all, wi_ref[...], preferred_element_type=jnp.float32)
              + bias_ref[0:1, :])                            # (LN, 3*HP)

    wh = wh_ref[...]                                         # (HP, 3*HP)
    # only b_hn must stay inside the recurrence (inside r * (...)); broadcast it ONCE
    bhn = jnp.broadcast_to(bias_ref[1:2, 2 * G:3 * G], (NP, G))

    h = h0_ref[...]                                          # (NP, HP)
    h_steps = []
    # L is a compile-time constant -> fully unrolled serial recurrence.
    for t in range(L):
        lo = t * NP
        gh = jnp.dot(h, wh, preferred_element_type=jnp.float32)   # 1 MXU op per step
        gi = gi_all[lo:lo + NP, :]                                 # full-tile slice
        r = jax.nn.sigmoid(gi[:, 0:G] + gh[:, 0:G])                # lane-aligned slices
        z = jax.nn.sigmoid(gi[:, G:2 * G] + gh[:, G:2 * G])
        n = jnp.tanh(gi[:, 2 * G:3 * G] + r * (gh[:, 2 * G:3 * G] + bhn))
        h = n + z * (h - n)                                        # == (1-z)*n + z*h
        h_steps.append(h)                                          # stays in vregs

    hs_ref[...] = h                                          # single final-state store

    # ---- batched output Linear: one matmul + one store for all L steps ----
    h_all = jnp.concatenate(h_steps, axis=0)                 # (LN, HP)
    y_ref[...] = (jnp.dot(h_all, wlin_ref[...], preferred_element_type=jnp.float32)
                  + blin_ref[...])


def prepare_decoder_params(p, lane=128):
    """One-time layout prep from PyTorch-layout params (transpose, fuse, pad, fold)."""
    w_ih = jnp.asarray(p["w_ih"], jnp.float32)
    w_hh = jnp.asarray(p["w_hh"], jnp.float32)
    b_ih = jnp.asarray(p["b_ih"], jnp.float32)
    b_hh = jnp.asarray(p["b_hh"], jnp.float32)
    H = w_hh.shape[1]
    HP = ((H + lane - 1) // lane) * lane                     # pad hidden to lane multiple

    def pad_cols(w):                                         # (K, H) -> (K, HP)
        return jnp.pad(w, ((0, 0), (0, HP - H)))

    def pad_vec(v):                                          # (H,) -> (HP,)
        return jnp.pad(v, (0, HP - H))

    # fused input weight (E, 3*HP): each gate in its own 128-lane group [r|z|n]
    wi = jnp.concatenate([pad_cols(w_ih[g * H:(g + 1) * H].T) for g in range(3)], axis=1)
    # fused hidden weight (HP, 3*HP): pad contraction rows and per-gate lanes with zeros
    wh = jnp.concatenate(
        [jnp.pad(w_hh[g * H:(g + 1) * H].T, ((0, HP - H), (0, HP - H))) for g in range(3)],
        axis=1)

    # bias slab (2, 3*HP):
    #   row 0 -> added once to the hoisted input projection (b_hr/b_hz folded in)
    #   row 1 -> only b_hn (must stay inside r * (...) in the recurrence)
    row0 = jnp.concatenate([pad_vec(b_ih[0:H] + b_hh[0:H]),
                            pad_vec(b_ih[H:2 * H] + b_hh[H:2 * H]),
                            pad_vec(b_ih[2 * H:3 * H])])
    row1 = jnp.concatenate([jnp.zeros((HP,), jnp.float32),
                            jnp.zeros((HP,), jnp.float32),
                            pad_vec(b_hh[2 * H:3 * H])])
    bias = jnp.stack([row0, row1])                           # (2, 3*HP)

    w_lin_t = jnp.pad(jnp.asarray(p["w_lin"], jnp.float32).T, ((0, HP - H), (0, 0)))
    b_lin = jnp.asarray(p["b_lin"], jnp.float32)[None, :]

    return {"emb": jnp.asarray(p["emb"], jnp.float32),
            "wi": wi, "wh": wh, "bias": bias,
            "w_lin_t": w_lin_t, "b_lin": b_lin}


@jax.jit
def translate_decoder_forward(x_ids, h0, dp):
    """x_ids: (L, N) int32 token ids; h0: (1, N, H) float32.

    Returns (logits (L, N, V), hs (1, N, H)) — same as the PyTorch forward.
    """
    L, N = x_ids.shape
    H = h0.shape[-1]
    HP = dp["wh"].shape[0]
    V = dp["w_lin_t"].shape[-1]
    NP = ((N + 7) // 8) * 8                                  # pad batch to f32 sublane tile

    ids_p = jnp.pad(x_ids.astype(jnp.int32), ((0, 0), (0, NP - N)))   # pad rows use PAD=0
    ids_flat = ids_p.reshape(L * NP, 1)                               # time-major rows
    h0_p = jnp.pad(h0[0].astype(jnp.float32), ((0, NP - N), (0, HP - H)))

    vmem = lambda: pl.BlockSpec(memory_space=pltpu.MemorySpace.VMEM)
    y_flat, hs_p = pl.pallas_call(
        gru_decoder_kernel,
        out_shape=(jax.ShapeDtypeStruct((L * NP, V), jnp.float32),
                   jax.ShapeDtypeStruct((NP, HP), jnp.float32)),
        in_specs=[vmem() for _ in range(8)],
        out_specs=(vmem(), vmem()),
    )(ids_flat, dp["emb"], h0_p, dp["wi"], dp["wh"], dp["bias"],
      dp["w_lin_t"], dp["b_lin"])

    y = y_flat.reshape(L, NP, V)[:, :N, :]                   # drop padded batch rows
    hs = hs_p[:N, :H][None]                                  # drop padded rows/cols
    return y, hs


def ref_forward(x_ids, h0, params):
    """Pure-JAX reference (PyTorch GRU semantics, fused torch-layout weights)."""
    embx = params["emb"][x_ids].astype(jnp.float32)
    H = h0.shape[-1]

    def step(h, x_t):
        gi = x_t @ params["w_ih"].T + params["b_ih"]
        gh = h @ params["w_hh"].T + params["b_hh"]
        i_r, i_z, i_n = gi[:, :H], gi[:, H:2 * H], gi[:, 2 * H:]
        h_r, h_z, h_n = gh[:, :H], gh[:, H:2 * H], gh[:, 2 * H:]
        r = jax.nn.sigmoid(i_r + h_r)
        z = jax.nn.sigmoid(i_z + h_z)
        n = jnp.tanh(i_n + r * h_n)
        h_new = (1.0 - z) * n + z * h
        return h_new, h_new

    h_last, hy = jax.lax.scan(step, h0[0], embx)
    logits = hy @ params["w_lin"].T + params["b_lin"]
    return logits, h_last[None]


def init_params(key, enc_in, enc_out, h):
    """Deterministic parameter init with PyTorch-like shapes/scales (torch layout)."""
    ks = jax.random.split(key, 7)
    s = 1.0 / jnp.sqrt(h)
    return {
        "emb":   jax.random.normal(ks[0], (enc_in, enc_out), jnp.float32),
        "w_ih":  jax.random.uniform(ks[1], (3 * h, enc_out), jnp.float32, -s, s),
        "w_hh":  jax.random.uniform(ks[2], (3 * h, h), jnp.float32, -s, s),
        "b_ih":  jax.random.uniform(ks[3], (3 * h,), jnp.float32, -s, s),
        "b_hh":  jax.random.uniform(ks[4], (3 * h,), jnp.float32, -s, s),
        "w_lin": jax.random.uniform(ks[5], (enc_in, h), jnp.float32, -s, s),
        "b_lin": jax.random.uniform(ks[6], (enc_in,), jnp.float32, -s, s),
    }


if __name__ == "__main__":
    ENC_IN = 16    # vocab size (decoder output size)
    ENC_OUT = 32   # embedding dim
    H = 32         # GRU hidden dim
    L, N = 8, 4    # seq length, batch

    key = jax.random.PRNGKey(0)
    kp, kx, kh = jax.random.split(key, 3)

    torch_params = init_params(kp, ENC_IN, ENC_OUT, H)
    dec_params = prepare_decoder_params(torch_params)        # one-time layout prep

    x_ids = jax.random.randint(kx, (L, N), 0, ENC_IN, dtype=jnp.int32)   # (seq, batch)
    h0 = jax.random.normal(kh, (1, N, H), jnp.float32)                    # (1, batch, h)

    y, hs = translate_decoder_forward(x_ids, h0, dec_params)
    y = jax.block_until_ready(y)
    hs = jax.block_until_ready(hs)

    y_ref, hs_ref = ref_forward(x_ids, h0, torch_params)
    assert jnp.allclose(y, y_ref, atol=1e-5, rtol=1e-5), "logits mismatch"
    assert jnp.allclose(hs, hs_ref, atol=1e-5, rtol=1e-5), "hidden-state mismatch"

    print("KERNEL_OK")
</pallas_src>

<mosaic_0001>
module attributes {stable_mosaic.version = 11 : i64} {
  func.func @gru_decoder_kernel(%arg0: memref<64x1xi32, #tpu.memory_space<vmem>>, %arg1: memref<16x32xf32, #tpu.memory_space<vmem>>, %arg2: memref<8x128xf32, #tpu.memory_space<vmem>>, %arg3: memref<32x384xf32, #tpu.memory_space<vmem>>, %arg4: memref<128x384xf32, #tpu.memory_space<vmem>>, %arg5: memref<2x384xf32, #tpu.memory_space<vmem>>, %arg6: memref<128x16xf32, #tpu.memory_space<vmem>>, %arg7: memref<1x16xf32, #tpu.memory_space<vmem>>, %arg8: memref<64x16xf32, #tpu.memory_space<vmem>>, %arg9: memref<8x128xf32, #tpu.memory_space<vmem>>) attributes {dimension_semantics = [], scalar_prefetch = 0 : i64, scratch_operands = 0 : i64, tpu.core_type = #tpu.core_type<tc>} {
    %c0 = arith.constant 0 : index
    %c0_0 = arith.constant 0 : index
    %0 = vector.load %arg0[%c0, %c0_0] : memref<64x1xi32, #tpu.memory_space<vmem>>, vector<64x1xi32>
    %1 = tpu.iota {dimensions = array<i32: 1>} : vector<64x16xi32>
    %2 = vector.broadcast %0 : vector<64x1xi32> to vector<64x16xi32>
    %3 = arith.cmpi eq, %1, %2 : vector<64x16xi32>
    %4 = arith.extui %3 : vector<64x16xi1> to vector<64x16xi32>
    %5 = arith.sitofp %4 : vector<64x16xi32> to vector<64x16xf32>
    %c0_1 = arith.constant 0 : index
    %c0_2 = arith.constant 0 : index
    %6 = vector.load %arg1[%c0_1, %c0_2] : memref<16x32xf32, #tpu.memory_space<vmem>>, vector<16x32xf32>
    %cst = arith.constant dense<0.000000e+00> : vector<64x32xf32>
    %7 = tpu.matmul %5, %6, %cst {dimension_numbers = #tpu.dot_dimension_numbers<[1], [0], [0], [1], [0, 0, 1, 1], [], []>} : vector<64x16xf32>, vector<16x32xf32>, vector<64x32xf32> -> vector<64x32xf32>
    %c0_3 = arith.constant 0 : index
    %c0_4 = arith.constant 0 : index
    %8 = vector.load %arg3[%c0_3, %c0_4] : memref<32x384xf32, #tpu.memory_space<vmem>>, vector<32x384xf32>
    %cst_5 = arith.constant dense<0.000000e+00> : vector<64x384xf32>
    %9 = tpu.matmul %7, %8, %cst_5 {dimension_numbers = #tpu.dot_dimension_numbers<[1], [0], [0], [1], [0, 0, 1, 1], [], []>} : vector<64x32xf32>, vector<32x384xf32>, vector<64x384xf32> -> vector<64x384xf32>
    %c0_6 = arith.constant 0 : index
    %c0_7 = arith.constant 0 : index
    %10 = vector.load %arg5[%c0_6, %c0_7] : memref<2x384xf32, #tpu.memory_space<vmem>>, vector<1x384xf32>
    %11 = vector.broadcast %10 : vector<1x384xf32> to vector<64x384xf32>
    %12 = arith.addf %9, %11 : vector<64x384xf32>
    %c0_8 = arith.constant 0 : index
    %c0_9 = arith.constant 0 : index
    %13 = vector.load %arg4[%c0_8, %c0_9] : memref<128x384xf32, #tpu.memory_space<vmem>>, vector<128x384xf32>
    %c1 = arith.constant 1 : index
    %c256 = arith.constant 256 : index
    %14 = vector.load %arg5[%c1, %c256] : memref<2x384xf32, #tpu.memory_space<vmem>>, vector<1x128xf32>
    %15 = vector.shape_cast %14 : vector<1x128xf32> to vector<1x128xf32>
    %16 = vector.broadcast %15 : vector<1x128xf32> to vector<8x128xf32>
    %c0_10 = arith.constant 0 : index
    %c0_11 = arith.constant 0 : index
    %17 = vector.load %arg2[%c0_10, %c0_11] : memref<8x128xf32, #tpu.memory_space<vmem>>, vector<8x128xf32>
    %cst_12 = arith.constant dense<0.000000e+00> : vector<8x384xf32>
    %18 = tpu.matmul %17, %13, %cst_12 {dimension_numbers = #tpu.dot_dimension_numbers<[1], [0], [0], [1], [0, 0, 1, 1], [], []>} : vector<8x128xf32>, vector<128x384xf32>, vector<8x384xf32> -> vector<8x384xf32>
    %19 = vector.extract_strided_slice %12 {offsets = [0, 0], sizes = [8, 384], strides = [1, 1]} : vector<64x384xf32> to vector<8x384xf32>
    %20 = vector.extract_strided_slice %19 {offsets = [0, 0], sizes = [8, 128], strides = [1, 1]} : vector<8x384xf32> to vector<8x128xf32>
    %21 = vector.extract_strided_slice %18 {offsets = [0, 0], sizes = [8, 128], strides = [1, 1]} : vector<8x384xf32> to vector<8x128xf32>
    %22 = arith.addf %20, %21 : vector<8x128xf32>
    %23 = arith.negf %22 : vector<8x128xf32>
    %24 = math.exp %23 : vector<8x128xf32>
    %cst_13 = arith.constant 1.000000e+00 : f32
    %25 = vector.broadcast %cst_13 : f32 to vector<8x128xf32>
    %26 = arith.addf %25, %24 : vector<8x128xf32>
    %27 = arith.divf %25, %26 : vector<8x128xf32>
    %28 = vector.extract_strided_slice %19 {offsets = [0, 128], sizes = [8, 128], strides = [1, 1]} : vector<8x384xf32> to vector<8x128xf32>
    %29 = vector.extract_strided_slice %18 {offsets = [0, 128], sizes = [8, 128], strides = [1, 1]} : vector<8x384xf32> to vector<8x128xf32>
    %30 = arith.addf %28, %29 : vector<8x128xf32>
    %31 = arith.negf %30 : vector<8x128xf32>
    %32 = math.exp %31 : vector<8x128xf32>
    %cst_14 = arith.constant 1.000000e+00 : f32
    %33 = vector.broadcast %cst_14 : f32 to vector<8x128xf32>
    %34 = arith.addf %33, %32 : vector<8x128xf32>
    %35 = arith.divf %33, %34 : vector<8x128xf32>
    %36 = vector.extract_strided_slice %19 {offsets = [0, 256], sizes = [8, 128], strides = [1, 1]} : vector<8x384xf32> to vector<8x128xf32>
    %37 = vector.extract_strided_slice %18 {offsets = [0, 256], sizes = [8, 128], strides = [1, 1]} : vector<8x384xf32> to vector<8x128xf32>
    %38 = arith.addf %37, %16 : vector<8x128xf32>
    %39 = arith.mulf %27, %38 : vector<8x128xf32>
    %40 = arith.addf %36, %39 : vector<8x128xf32>
    %41 = math.tanh %40 : vector<8x128xf32>
    %42 = arith.subf %17, %41 : vector<8x128xf32>
    %43 = arith.mulf %35, %42 : vector<8x128xf32>
    %44 = arith.addf %41, %43 : vector<8x128xf32>
    %cst_15 = arith.constant dense<0.000000e+00> : vector<8x384xf32>
    %45 = tpu.matmul %44, %13, %cst_15 {dimension_numbers = #tpu.dot_dimension_numbers<[1], [0], [0], [1], [0, 0, 1, 1], [], []>} : vector<8x128xf32>, vector<128x384xf32>, vector<8x384xf32> -> vector<8x384xf32>
    %46 = vector.extract_strided_slice %12 {offsets = [8, 0], sizes = [8, 384], strides = [1, 1]} : vector<64x384xf32> to vector<8x384xf32>
    %47 = vector.extract_strided_slice %46 {offsets = [0, 0], sizes = [8, 128], strides = [1, 1]} : vector<8x384xf32> to vector<8x128xf32>
    %48 = vector.extract_strided_slice %45 {offsets = [0, 0], sizes = [8, 128], strides = [1, 1]} : vector<8x384xf32> to vector<8x128xf32>
    %49 = arith.addf %47, %48 : vector<8x128xf32>
    %50 = arith.negf %49 : vector<8x128xf32>
    %51 = math.exp %50 : vector<8x128xf32>
    %cst_16 = arith.constant 1.000000e+00 : f32
    %52 = vector.broadcast %cst_16 : f32 to vector<8x128xf32>
    %53 = arith.addf %52, %51 : vector<8x128xf32>
    %54 = arith.divf %52, %53 : vector<8x128xf32>
    %55 = vector.extract_strided_slice %46 {offsets = [0, 128], sizes = [8, 128], strides = [1, 1]} : vector<8x384xf32> to vector<8x128xf32>
    %56 = vector.extract_strided_slice %45 {offsets = [0, 128], sizes = [8, 128], strides = [1, 1]} : vector<8x384xf32> to vector<8x128xf32>
    %57 = arith.addf %55, %56 : vector<8x128xf32>
    %58 = arith.negf %57 : vector<8x128xf32>
    %59 = math.exp %58 : vector<8x128xf32>
    %cst_17 = arith.constant 1.000000e+00 : f32
    %60 = vector.broadcast %cst_17 : f32 to vector<8x128xf32>
    %61 = arith.addf %60, %59 : vector<8x128xf32>
    %62 = arith.divf %60, %61 : vector<8x128xf32>
    %63 = vector.extract_strided_slice %46 {offsets = [0, 256], sizes = [8, 128], strides = [1, 1]} : vector<8x384xf32> to vector<8x128xf32>
    %64 = vector.extract_strided_slice %45 {offsets = [0, 256], sizes = [8, 128], strides = [1, 1]} : vector<8x384xf32> to vector<8x128xf32>
    %65 = arith.addf %64, %16 : vector<8x128xf32>
    %66 = arith.mulf %54, %65 : vector<8x128xf32>
    %67 = arith.addf %63, %66 : vector<8x128xf32>
    %68 = math.tanh %67 : vector<8x128xf32>
    %69 = arith.subf %44, %68 : vector<8x128xf32>
    %70 = arith.mulf %62, %69 : vector<8x128xf32>
    %71 = arith.addf %68, %70 : vector<8x128xf32>
    %cst_18 = arith.constant dense<0.000000e+00> : vector<8x384xf32>
    %72 = tpu.matmul %71, %13, %cst_18 {dimension_numbers = #tpu.dot_dimension_numbers<[1], [0], [0], [1], [0, 0, 1, 1], [], []>} : vector<8x128xf32>, vector<128x384xf32>, vector<8x384xf32> -> vector<8x384xf32>
    %73 = vector.extract_strided_slice %12 {offsets = [16, 0], sizes = [8, 384], strides = [1, 1]} : vector<64x384xf32> to vector<8x384xf32>
    %74 = vector.extract_strided_slice %73 {offsets = [0, 0], sizes = [8, 128], strides = [1, 1]} : vector<8x384xf32> to vector<8x128xf32>
    %75 = vector.extract_strided_slice %72 {offsets = [0, 0], sizes = [8, 128], strides = [1, 1]} : vector<8x384xf32> to vector<8x128xf32>
    %76 = arith.addf %74, %75 : vector<8x128xf32>
    %77 = arith.negf %76 : vector<8x128xf32>
    %78 = math.exp %77 : vector<8x128xf32>
    %cst_19 = arith.constant 1.000000e+00 : f32
    %79 = vector.broadcast %cst_19 : f32 to vector<8x128xf32>
    %80 = arith.addf %79, %78 : vector<8x128xf32>
    %81 = arith.divf %79, %80 : vector<8x128xf32>
    %82 = vector.extract_strided_slice %73 {offsets = [0, 128], sizes = [8, 128], strides = [1, 1]} : vector<8x384xf32> to vector<8x128xf32>
    %83 = vector.extract_strided_slice %72 {offsets = [0, 128], sizes = [8, 128], strides = [1, 1]} : vector<8x384xf32> to vector<8x128xf32>
    %84 = arith.addf %82, %83 : vector<8x128xf32>
    %85 = arith.negf %84 : vector<8x128xf32>
    %86 = math.exp %85 : vector<8x128xf32>
    %cst_20 = arith.constant 1.000000e+00 : f32
    %87 = vector.broadcast %cst_20 : f32 to vector<8x128xf32>
    %88 = arith.addf %87, %86 : vector<8x128xf32>
    %89 = arith.divf %87, %88 : vector<8x128xf32>
    %90 = vector.extract_strided_slice %73 {offsets = [0, 256], sizes = [8, 128], strides = [1, 1]} : vector<8x384xf32> to vector<8x128xf32>
    %91 = vector.extract_strided_slice %72 {offsets = [0, 256], sizes = [8, 128], strides = [1, 1]} : vector<8x384xf32> to vector<8x128xf32>
    %92 = arith.addf %91, %16 : vector<8x128xf32>
    %93 = arith.mulf %81, %92 : vector<8x128xf32>
    %94 = arith.addf %90, %93 : vector<8x128xf32>
    %95 = math.tanh %94 : vector<8x128xf32>
    %96 = arith.subf %71, %95 : vector<8x128xf32>
    %97 = arith.mulf %89, %96 : vector<8x128xf32>
    %98 = arith.addf %95, %97 : vector<8x128xf32>
    %cst_21 = arith.constant dense<0.000000e+00> : vector<8x384xf32>
    %99 = tpu.matmul %98, %13, %cst_21 {dimension_numbers = #tpu.dot_dimension_numbers<[1], [0], [0], [1], [0, 0, 1, 1], [], []>} : vector<8x128xf32>, vector<128x384xf32>, vector<8x384xf32> -> vector<8x384xf32>
    %100 = vector.extract_strided_slice %12 {offsets = [24, 0], sizes = [8, 384], strides = [1, 1]} : vector<64x384xf32> to vector<8x384xf32>
    %101 = vector.extract_strided_slice %100 {offsets = [0, 0], sizes = [8, 128], strides = [1, 1]} : vector<8x384xf32> to vector<8x128xf32>
    %102 = vector.extract_strided_slice %99 {offsets = [0, 0], sizes = [8, 128], strides = [1, 1]} : vector<8x384xf32> to vector<8x128xf32>
    %103 = arith.addf %101, %102 : vector<8x128xf32>
    %104 = arith.negf %103 : vector<8x128xf32>
    %105 = math.exp %104 : vector<8x128xf32>
    %cst_22 = arith.constant 1.000000e+00 : f32
    %106 = vector.broadcast %cst_22 : f32 to vector<8x128xf32>
    %107 = arith.addf %106, %105 : vector<8x128xf32>
    %108 = arith.divf %106, %107 : vector<8x128xf32>
    %109 = vector.extract_strided_slice %100 {offsets = [0, 128], sizes = [8, 128], strides = [1, 1]} : vector<8x384xf32> to vector<8x128xf32>
    %110 = vector.extract_strided_slice %99 {offsets = [0, 128], sizes = [8, 128], strides = [1, 1]} : vector<8x384xf32> to vector<8x128xf32>
    %111 = arith.addf %109, %110 : vector<8x128xf32>
    %112 = arith.negf %111 : vector<8x128xf32>
    %113 = math.exp %112 : vector<8x128xf32>
    %cst_23 = arith.constant 1.000000e+00 : f32
    %114 = vector.broadcast %cst_23 : f32 to vector<8x128xf32>
    %115 = arith.addf %114, %113 : vector<8x128xf32>
    %116 = arith.divf %114, %115 : vector<8x128xf32>
    %117 = vector.extract_strided_slice %100 {offsets = [0, 256], sizes = [8, 128], strides = [1, 1]} : vector<8x384xf32> to vector<8x128xf32>
    %118 = vector.extract_strided_slice %99 {offsets = [0, 256], sizes = [8, 128], strides = [1, 1]} : vector<8x384xf32> to vector<8x128xf32>
    %119 = arith.addf %118, %16 : vector<8x128xf32>
    %120 = arith.mulf %108, %119 : vector<8x128xf32>
    %121 = arith.addf %117, %120 : vector<8x128xf32>
    %122 = math.tanh %121 : vector<8x128xf32>
    %123 = arith.subf %98, %122 : vector<8x128xf32>
    %124 = arith.mulf %116, %123 : vector<8x128xf32>
    %125 = arith.addf %122, %124 : vector<8x128xf32>
    %cst_24 = arith.constant dense<0.000000e+00> : vector<8x384xf32>
    %126 = tpu.matmul %125, %13, %cst_24 {dimension_numbers = #tpu.dot_dimension_numbers<[1], [0], [0], [1], [0, 0, 1, 1], [], []>} : vector<8x128xf32>, vector<128x384xf32>, vector<8x384xf32> -> vector<8x384xf32>
    %127 = vector.extract_strided_slice %12 {offsets = [32, 0], sizes = [8, 384], strides = [1, 1]} : vector<64x384xf32> to vector<8x384xf32>
    %128 = vector.extract_strided_slice %127 {offsets = [0, 0], sizes = [8, 128], strides = [1, 1]} : vector<8x384xf32> to vector<8x128xf32>
    %129 = vector.extract_strided_slice %126 {offsets = [0, 0], sizes = [8, 128], strides = [1, 1]} : vector<8x384xf32> to vector<8x128xf32>
    %130 = arith.addf %128, %129 : vector<8x128xf32>
    %131 = arith.negf %130 : vector<8x128xf32>
    %132 = math.exp %131 : vector<8x128xf32>
    %cst_25 = arith.constant 1.000000e+00 : f32
    %133 = vector.broadcast %cst_25 : f32 to vector<8x128xf32>
    %134 = arith.addf %133, %132 : vector<8x128xf32>
    %135 = arith.divf %133, %134 : vector<8x128xf32>
    %136 = vector.extract_strided_slice %127 {offsets = [0, 128], sizes = [8, 128], strides = [1, 1]} : vector<8x384xf32> to vector<8x128xf32>
    %137 = vector.extract_strided_slice %126 {offsets = [0, 128], sizes = [8, 128], strides = [1, 1]} : vector<8x384xf32> to vector<8x128xf32>
    %138 = arith.addf %136, %137 : vector<8x128xf32>
    %139 = arith.negf %138 : vector<8x128xf32>
    %140 = math.exp %139 : vector<8x128xf32>
    %cst_26 = arith.constant 1.000000e+00 : f32
    %141 = vector.broadcast %cst_26 : f32 to vector<8x128xf32>
    %142 = arith.addf %141, %140 : vector<8x128xf32>
    %143 = arith.divf %141, %142 : vector<8x128xf32>
    %144 = vector.extract_strided_slice %127 {offsets = [0, 256], sizes = [8, 128], strides = [1, 1]} : vector<8x384xf32> to vector<8x128xf32>
    %145 = vector.extract_strided_slice %126 {offsets = [0, 256], sizes = [8, 128], strides = [1, 1]} : vector<8x384xf32> to vector<8x128xf32>
    %146 = arith.addf %145, %16 : vector<8x128xf32>
    %147 = arith.mulf %135, %146 : vector<8x128xf32>
    %148 = arith.addf %144, %147 : vector<8x128xf32>
    %149 = math.tanh %148 : vector<8x128xf32>
    %150 = arith.subf %125, %149 : vector<8x128xf32>
    %151 = arith.mulf %143, %150 : vector<8x128xf32>
    %152 = arith.addf %149, %151 : vector<8x128xf32>
    %cst_27 = arith.constant dense<0.000000e+00> : vector<8x384xf32>
    %153 = tpu.matmul %152, %13, %cst_27 {dimension_numbers = #tpu.dot_dimension_numbers<[1], [0], [0], [1], [0, 0, 1, 1], [], []>} : vector<8x128xf32>, vector<128x384xf32>, vector<8x384xf32> -> vector<8x384xf32>
    %154 = vector.extract_strided_slice %12 {offsets = [40, 0], sizes = [8, 384], strides = [1, 1]} : vector<64x384xf32> to vector<8x384xf32>
    %155 = vector.extract_strided_slice %154 {offsets = [0, 0], sizes = [8, 128], strides = [1, 1]} : vector<8x384xf32> to vector<8x128xf32>
    %156 = vector.extract_strided_slice %153 {offsets = [0, 0], sizes = [8, 128], strides = [1, 1]} : vector<8x384xf32> to vector<8x128xf32>
    %157 = arith.addf %155, %156 : vector<8x128xf32>
    %158 = arith.negf %157 : vector<8x128xf32>
    %159 = math.exp %158 : vector<8x128xf32>
    %cst_28 = arith.constant 1.000000e+00 : f32
    %160 = vector.broadcast %cst_28 : f32 to vector<8x128xf32>
    %161 = arith.addf %160, %159 : vector<8x128xf32>
    %162 = arith.divf %160, %161 : vector<8x128xf32>
    %163 = vector.extract_strided_slice %154 {offsets = [0, 128], sizes = [8, 128], strides = [1, 1]} : vector<8x384xf32> to vector<8x128xf32>
    %164 = vector.extract_strided_slice %153 {offsets = [0, 128], sizes = [8, 128], strides = [1, 1]} : vector<8x384xf32> to vector<8x128xf32>
    %165 = arith.addf %163, %164 : vector<8x128xf32>
    %166 = arith.negf %165 : vector<8x128xf32>
    %167 = math.exp %166 : vector<8x128xf32>
    %cst_29 = arith.constant 1.000000e+00 : f32
    %168 = vector.broadcast %cst_29 : f32 to vector<8x128xf32>
    %169 = arith.addf %168, %167 : vector<8x128xf32>
    %170 = arith.divf %168, %169 : vector<8x128xf32>
    %171 = vector.extract_strided_slice %154 {offsets = [0, 256], sizes = [8, 128], strides = [1, 1]} : vector<8x384xf32> to vector<8x128xf32>
    %172 = vector.extract_strided_slice %153 {offsets = [0, 256], sizes = [8, 128], strides = [1, 1]} : vector<8x384xf32> to vector<8x128xf32>
    %173 = arith.addf %172, %16 : vector<8x128xf32>
    %174 = arith.mulf %162, %173 : vector<8x128xf32>
    %175 = arith.addf %171, %174 : vector<8x128xf32>
    %176 = math.tanh %175 : vector<8x128xf32>
    %177 = arith.subf %152, %176 : vector<8x128xf32>
    %178 = arith.mulf %170, %177 : vector<8x128xf32>
    %179 = arith.addf %176, %178 : vector<8x128xf32>
    %cst_30 = arith.constant dense<0.000000e+00> : vector<8x384xf32>
    %180 = tpu.matmul %179, %13, %cst_30 {dimension_numbers = #tpu.dot_dimension_numbers<[1], [0], [0], [1], [0, 0, 1, 1], [], []>} : vector<8x128xf32>, vector<128x384xf32>, vector<8x384xf32> -> vector<8x384xf32>
    %181 = vector.extract_strided_slice %12 {offsets = [48, 0], sizes = [8, 384], strides = [1, 1]} : vector<64x384xf32> to vector<8x384xf32>
    %182 = vector.extract_strided_slice %181 {offsets = [0, 0], sizes = [8, 128], strides = [1, 1]} : vector<8x384xf32> to vector<8x128xf32>
    %183 = vector.extract_strided_slice %180 {offsets = [0, 0], sizes = [8, 128], strides = [1, 1]} : vector<8x384xf32> to vector<8x128xf32>
    %184 = arith.addf %182, %183 : vector<8x128xf32>
    %185 = arith.negf %184 : vector<8x128xf32>
    %186 = math.exp %185 : vector<8x128xf32>
    %cst_31 = arith.constant 1.000000e+00 : f32
    %187 = vector.broadcast %cst_31 : f32 to vector<8x128xf32>
    %188 = arith.addf %187, %186 : vector<8x128xf32>
    %189 = arith.divf %187, %188 : vector<8x128xf32>
    %190 = vector.extract_strided_slice %181 {offsets = [0, 128], sizes = [8, 128], strides = [1, 1]} : vector<8x384xf32> to vector<8x128xf32>
    %191 = vector.extract_strided_slice %180 {offsets = [0, 128], sizes = [8, 128], strides = [1, 1]} : vector<8x384xf32> to vector<8x128xf32>
    %192 = arith.addf %190, %191 : vector<8x128xf32>
    %193 = arith.negf %192 : vector<8x128xf32>
    %194 = math.exp %193 : vector<8x128xf32>
    %cst_32 = arith.constant 1.000000e+00 : f32
    %195 = vector.broadcast %cst_32 : f32 to vector<8x128xf32>
    %196 = arith.addf %195, %194 : vector<8x128xf32>
    %197 = arith.divf %195, %196 : vector<8x128xf32>
    %198 = vector.extract_strided_slice %181 {offsets = [0, 256], sizes = [8, 128], strides = [1, 1]} : vector<8x384xf32> to vector<8x128xf32>
    %199 = vector.extract_strided_slice %180 {offsets = [0, 256], sizes = [8, 128], strides = [1, 1]} : vector<8x384xf32> to vector<8x128xf32>
    %200 = arith.addf %199, %16 : vector<8x128xf32>
    %201 = arith.mulf %189, %200 : vector<8x128xf32>
    %202 = arith.addf %198, %201 : vector<8x128xf32>
    %203 = math.tanh %202 : vector<8x128xf32>
    %204 = arith.subf %179, %203 : vector<8x128xf32>
    %205 = arith.mulf %197, %204 : vector<8x128xf32>
    %206 = arith.addf %203, %205 : vector<8x128xf32>
    %cst_33 = arith.constant dense<0.000000e+00> : vector<8x384xf32>
    %207 = tpu.matmul %206, %13, %cst_33 {dimension_numbers = #tpu.dot_dimension_numbers<[1], [0], [0], [1], [0, 0, 1, 1], [], []>} : vector<8x128xf32>, vector<128x384xf32>, vector<8x384xf32> -> vector<8x384xf32>
    %208 = vector.extract_strided_slice %12 {offsets = [56, 0], sizes = [8, 384], strides = [1, 1]} : vector<64x384xf32> to vector<8x384xf32>
    %209 = vector.extract_strided_slice %208 {offsets = [0, 0], sizes = [8, 128], strides = [1, 1]} : vector<8x384xf32> to vector<8x128xf32>
    %210 = vector.extract_strided_slice %207 {offsets = [0, 0], sizes = [8, 128], strides = [1, 1]} : vector<8x384xf32> to vector<8x128xf32>
    %211 = arith.addf %209, %210 : vector<8x128xf32>
    %212 = arith.negf %211 : vector<8x128xf32>
    %213 = math.exp %212 : vector<8x128xf32>
    %cst_34 = arith.constant 1.000000e+00 : f32
    %214 = vector.broadcast %cst_34 : f32 to vector<8x128xf32>
    %215 = arith.addf %214, %213 : vector<8x128xf32>
    %216 = arith.divf %214, %215 : vector<8x128xf32>
    %217 = vector.extract_strided_slice %208 {offsets = [0, 128], sizes = [8, 128], strides = [1, 1]} : vector<8x384xf32> to vector<8x128xf32>
    %218 = vector.extract_strided_slice %207 {offsets = [0, 128], sizes = [8, 128], strides = [1, 1]} : vector<8x384xf32> to vector<8x128xf32>
    %219 = arith.addf %217, %218 : vector<8x128xf32>
    %220 = arith.negf %219 : vector<8x128xf32>
    %221 = math.exp %220 : vector<8x128xf32>
    %cst_35 = arith.constant 1.000000e+00 : f32
    %222 = vector.broadcast %cst_35 : f32 to vector<8x128xf32>
    %223 = arith.addf %222, %221 : vector<8x128xf32>
    %224 = arith.divf %222, %223 : vector<8x128xf32>
    %225 = vector.extract_strided_slice %208 {offsets = [0, 256], sizes = [8, 128], strides = [1, 1]} : vector<8x384xf32> to vector<8x128xf32>
    %226 = vector.extract_strided_slice %207 {offsets = [0, 256], sizes = [8, 128], strides = [1, 1]} : vector<8x384xf32> to vector<8x128xf32>
    %227 = arith.addf %226, %16 : vector<8x128xf32>
    %228 = arith.mulf %216, %227 : vector<8x128xf32>
    %229 = arith.addf %225, %228 : vector<8x128xf32>
    %230 = math.tanh %229 : vector<8x128xf32>
    %231 = arith.subf %206, %230 : vector<8x128xf32>
    %232 = arith.mulf %224, %231 : vector<8x128xf32>
    %233 = arith.addf %230, %232 : vector<8x128xf32>
    %c0_36 = arith.constant 0 : index
    %c0_37 = arith.constant 0 : index
    %234 = vector.load %arg9[%c0_36, %c0_37] : memref<8x128xf32, #tpu.memory_space<vmem>>, vector<8x128xf32>
    tpu.vector_store %arg9[%c0_36, %c0_37], %233 {strides = array<i32>} : memref<8x128xf32, #tpu.memory_space<vmem>>, vector<8x128xf32>,
    %235 = tpu.concatenate %44, %71, %98, %125, %152, %179, %206, %233 in 0 : vector<8x128xf32>, vector<8x128xf32>, vector<8x128xf32>, vector<8x128xf32>, vector<8x128xf32>, vector<8x128xf32>, vector<8x128xf32>, vector<8x128xf32> -> vector<64x128xf32>
    %c0_38 = arith.constant 0 : index
    %c0_39 = arith.constant 0 : index
    %236 = vector.load %arg6[%c0_38, %c0_39] : memref<128x16xf32, #tpu.memory_space<vmem>>, vector<128x16xf32>
    %cst_40 = arith.constant dense<0.000000e+00> : vector<64x16xf32>
    %237 = tpu.matmul %235, %236, %cst_40 {dimension_numbers = #tpu.dot_dimension_numbers<[1], [0], [0], [1], [0, 0, 1, 1], [], []>} : vector<64x128xf32>, vector<128x16xf32>, vector<64x16xf32> -> vector<64x16xf32>
    %c0_41 = arith.constant 0 : index
    %c0_42 = arith.constant 0 : index
    %238 = vector.load %arg7[%c0_41, %c0_42] : memref<1x16xf32, #tpu.memory_space<vmem>>, vector<1x16xf32>
    %239 = vector.broadcast %238 : vector<1x16xf32> to vector<64x16xf32>
    %240 = arith.addf %237, %239 : vector<64x16xf32>
    %c0_43 = arith.constant 0 : index
    %c0_44 = arith.constant 0 : index
    %241 = vector.load %arg8[%c0_43, %c0_44] : memref<64x16xf32, #tpu.memory_space<vmem>>, vector<64x16xf32>
    tpu.vector_store %arg8[%c0_43, %c0_44], %240 {strides = array<i32>} : memref<64x16xf32, #tpu.memory_space<vmem>>, vector<64x16xf32>,
    return
  }
}

</mosaic_0001>

<llo_original>
// kernel: translate_decoder_forward.1
$region0: #{translate_decoder_forward.1}
  #allocation0 [shape = 'u32[]', space=smem, size = 0x4, offset = 0x4, fixed_abs, tag = 'smem constant byte address 0x4 - core index']
  #allocation1 [shape = 'u32[72,128]{1,0:T(1,128)}', space=vmem, size = 0x9000, scoped, tag = 'internal scratch']
  %s0 = inlined_call_operand.vmem [shape: s32[64,1], index: 0, kind: input, shape index: {}]
  %s1 = inlined_call_operand.vmem [shape: f32[16,32], index: 1, kind: input, shape index: {}]
  %s2 = inlined_call_operand.vmem [shape: f32[8,128], index: 2, kind: input, shape index: {}]
  %s3 = inlined_call_operand.vmem [shape: f32[32,384], index: 3, kind: input, shape index: {}]
  %s4 = inlined_call_operand.hbm [shape: f32[128,384], index: 4, kind: input, shape index: {}]
  %s5 = inlined_call_operand.vmem [shape: f32[2,384], index: 5, kind: input, shape index: {}]
  %s6 = inlined_call_operand.vmem [shape: f32[128,16], index: 6, kind: input, shape index: {}]
  %s7 = inlined_call_operand.vmem [shape: f32[1,16], index: 7, kind: input, shape index: {}]
  %s8 = inlined_call_operand.vmem [shape: f32[64,16], index: 8, kind: output, shape index: {0}]
  %s9 = inlined_call_operand.vmem [shape: f32[8,128], index: 9, kind: output, shape index: {1}]
  %10 = xla_tuple %s8, %s9
  %s11 = sld [smem:[#allocation0]]
  $region54: #{translate_decoder_forward.1} parent=0
    _
  %s13 = ssub.s32 1, %s11
  %s14 = scalar_select 0, %s13, %s11
  $region1: #{translate_decoder_forward.1} parent=0
    #allocation2 [shape = 'u8[196608]{0}', space=vmem, size = 0x30000, scoped, tag = 'input window, operand 4, single buffered']
    #allocation3 [shape = 's32[1]{0}', space=sflag, size = 0x4, scoped, tag = 'scoped memory for translate_decoder_forward.1']
    %15 = vsyncpa [#allocation3], 0
    // Predicated region
    $region2: #{translate_decoder_forward.1} parent=1 // pred_check
      _
    $region3: #{translate_decoder_forward.1} parent=1 // pred_check_branch
      %17 = sbr.rel (0) target = $region5
    $region4: #{translate_decoder_forward.1} parent=1 // pred_region
      _
    $region5: #{translate_decoder_forward.1} parent=1 // pred_fallthru
      _
    // Predicated region
    $region6: #{translate_decoder_forward.1} parent=1 // pred_check
      _
    $region7: #{translate_decoder_forward.1} parent=1 // pred_check_branch
      %19 = sbr.rel (0) target = $region9
    $region8: #{translate_decoder_forward.1} parent=1 // pred_region
      _
    $region9: #{translate_decoder_forward.1} parent=1 // pred_fallthru
      _
    // Predicated region
    $region10: #{translate_decoder_forward.1} parent=1 // pred_check
      _
    $region11: #{translate_decoder_forward.1} parent=1 // pred_check_branch
      %21 = sbr.rel (0) target = $region13
    $region12: #{translate_decoder_forward.1} parent=1 // pred_region
      _
    $region13: #{translate_decoder_forward.1} parent=1 // pred_fallthru
      _
    // Predicated region
    $region14: #{translate_decoder_forward.1} parent=1 // pred_check
      _
    $region15: #{translate_decoder_forward.1} parent=1 // pred_check_branch
      %23 = sbr.rel (0) target = $region17
    $region16: #{translate_decoder_forward.1} parent=1 // pred_region
      _
    $region17: #{translate_decoder_forward.1} parent=1 // pred_fallthru
      _
    // Predicated region
    $region18: #{translate_decoder_forward.1} parent=1 // pred_check
      _
    $region19: #{translate_decoder_forward.1} parent=1 // pred_check_branch
      %25 = sbr.rel (0) target = $region21
    $region20: #{translate_decoder_forward.1} parent=1 // pred_region
      %27 = vsyncadd [#allocation3], 0
      %s28 = sshll.u32 %s4, 4
      %s29 = int_to_ptr.hbm [resolvable:$true] %s28
      %s30 = sshll.u32 [#allocation2], 4
      %s31 = int_to_ptr.vmem [resolvable:$true] %s30
      %36 = dma.hbm_to_vmem [thread:$0]  %s29, 6144, %s31, [#allocation3], 384, 384, 24
    $region21: #{translate_decoder_forward.1} parent=1 // pred_fallthru
      _
    // Predicated region
    $region22: #{translate_decoder_forward.1} parent=1 // pred_check
      _
    $region23: #{translate_decoder_forward.1} parent=1 // pred_check_branch
      %38 = sbr.rel (0) target = $region25
    $region24: #{translate_decoder_forward.1} parent=1 // pred_region
      _
    $region25: #{translate_decoder_forward.1} parent=1 // pred_fallthru
      _
    // Predicated region
    $region26: #{translate_decoder_forward.1} parent=1 // pred_check
      _
    $region27: #{translate_decoder_forward.1} parent=1 // pred_check_branch
      %40 = sbr.rel (0) target = $region29
    $region28: #{translate_decoder_forward.1} parent=1 // pred_region
      _
    $region29: #{translate_decoder_forward.1} parent=1 // pred_fallthru
      _
    // Predicated region
    $region30: #{translate_decoder_forward.1} parent=1 // pred_check
      _
    $region31: #{translate_decoder_forward.1} parent=1 // pred_check_branch
      %42 = sbr.rel (0) target = $region33
    $region32: #{translate_decoder_forward.1} parent=1 // pred_region
      _
    $region33: #{translate_decoder_forward.1} parent=1 // pred_fallthru
      _
    // Predicated region
    $region34: #{translate_decoder_forward.1} parent=1 // pred_check
      _
    $region35: #{translate_decoder_forward.1} parent=1 // pred_check_branch
      %44 = sbr.rel (0) target = $region37
    $region36: #{translate_decoder_forward.1} parent=1 // pred_region
      %46 = dma.done [#allocation3], 6144
    $region37: #{translate_decoder_forward.1} parent=1 // pred_fallthru
      _
    %v47 = vld [vmem:[%s0] sm:$0xff]
    %v48 = vld [vmem:[%s0 + $0x8] sm:$0xff]
    %v49 = vld [vmem:[%s0 + $0x10] sm:$0xff]
    %v50 = vld [vmem:[%s0 + $0x18] sm:$0xff]
    %v51 = vld [vmem:[%s0 + $0x20] sm:$0xff]
    %v52 = vld [vmem:[%s0 + $0x28] sm:$0xff]
    %v53 = vld [vmem:[%s0 + $0x30] sm:$0xff]
    %v54 = vld [vmem:[%s0 + $0x38] sm:$0xff]
    %v55 = vlaneseq
    %v56 = vand.u32 %v55, 127
    %57 = vset.pattern.permute.xlu0 0
    %58 = vperm.xlu0 %57, %v47
    %v59 = vpop.permute.xlu0 %58
    %60 = vset.pattern.permute.xlu0 0
    %61 = vperm.xlu0 %60, %v48
    %v62 = vpop.permute.xlu0 %61
    %63 = vset.pattern.permute.xlu0 0
    %64 = vperm.xlu0 %63, %v49
    %v65 = vpop.permute.xlu0 %64
    %66 = vset.pattern.permute.xlu0 0
    %67 = vperm.xlu0 %66, %v50
    %v68 = vpop.permute.xlu0 %67
    %69 = vset.pattern.permute.xlu0 0
    %70 = vperm.xlu0 %69, %v51
    %v71 = vpop.permute.xlu0 %70
    %72 = vset.pattern.permute.xlu0 0
    %73 = vperm.xlu0 %72, %v52
    %v74 = vpop.permute.xlu0 %73
    %75 = vset.pattern.permute.xlu0 0
    %76 = vperm.xlu0 %75, %v53
    %v77 = vpop.permute.xlu0 %76
    %78 = vset.pattern.permute.xlu0 0
    %79 = vperm.xlu0 %78, %v54
    %v80 = vpop.permute.xlu0 %79
    %vm81 = vcmp.eq.s32.totalorder %v56, %v59
    %vm82 = vcmp.eq.s32.totalorder %v56, %v62
    %vm83 = vcmp.eq.s32.totalorder %v56, %v65
    %vm84 = vcmp.eq.s32.totalorder %v56, %v68
    %vm85 = vcmp.eq.s32.totalorder %v56, %v71
    %vm86 = vcmp.eq.s32.totalorder %v56, %v74
    %vm87 = vcmp.eq.s32.totalorder %v56, %v77
    %vm88 = vcmp.eq.s32.totalorder %v56, %v80
    %v89 = vsel %vm81, 1, 0
    %v90 = vsel %vm82, 1, 0
    %v91 = vsel %vm83, 1, 0
    %v92 = vsel %vm84, 1, 0
    %v93 = vsel %vm85, 1, 0
    %v94 = vsel %vm86, 1, 0
    %v95 = vsel %vm87, 1, 0
    %v96 = vsel %vm88, 1, 0
    %v97 = vcvt.s32.f32 %v89
    %v98 = vcvt.s32.f32 %v90
    %v99 = vcvt.s32.f32 %v91
    %v100 = vcvt.s32.f32 %v92
    %v101 = vcvt.s32.f32 %v93
    %v102 = vcvt.s32.f32 %v94
    %v103 = vcvt.s32.f32 %v95
    %v104 = vcvt.s32.f32 %v96
    %v105 = vld [vmem:[%s1] sm:$0xff]
    %v106 = vld [vmem:[%s1 + $0x8] sm:$0xff]
    %vm107 = vcmask 130048
    %v109 = vsel %vm107, %v97, 0
    %v112 = vsel %vm107, %v98, 0
    %v115 = vsel %vm107, %v99, 0
    %v118 = vsel %vm107, %v100, 0
    %v121 = vsel %vm107, %v101, 0
    %v124 = vsel %vm107, %v102, 0
    %v127 = vsel %vm107, %v103, 0
    %v130 = vsel %vm107, %v104, 0
    %132 = vmatpush.msra.mxu0 0.0
    %133 = vmatpush.msra.mxu0 0.0
    %134 = vmatpush.msra.mxu0 0.0
    %135 = vmatpush.msra.mxu0 0.0
    %136 = vmatpush.msra.mxu0 0.0
    %137 = vmatpush.msra.mxu0 0.0
    %138 = vmatpush.msra.mxu0 0.0
    %139 = vmatpush.msra.mxu0 0.0
    %140 = vmatpush.msra.mxu0 0.0
    %141 = vmatpush.msra.mxu0 0.0
    %142 = vmatpush.msra.mxu0 0.0
    %143 = vmatpush.msra.mxu0 0.0
    %144 = vmatpush.msra.mxu0 0.0
    %145 = vmatpush.msra.mxu0 0.0
    %146 = vmatpush.msra.mxu0 %v106
    %147 = vmatpush.msra.mxu0 %v105
    %148 = vmatmul.f32.gmra.mxu0 %v109
    %v149 = vpop.f32.mrf.mxu0
    %v150 = vadd.f32 0.0, %v149
    %151 = vmatmul.f32.gmra.mxu0 %v112
    %v152 = vpop.f32.mrf.mxu0
    %v153 = vadd.f32 0.0, %v152
    %154 = vmatmul.f32.gmra.mxu0 %v115
    %v155 = vpop.f32.mrf.mxu0
    %v156 = vadd.f32 0.0, %v155
    %157 = vmatmul.f32.gmra.mxu0 %v118
    %v158 = vpop.f32.mrf.mxu0
    %v159 = vadd.f32 0.0, %v158
    %160 = vmatmul.f32.gmra.mxu0 %v121
    %v161 = vpop.f32.mrf.mxu0
    %v162 = vadd.f32 0.0, %v161
    %163 = vmatmul.f32.gmra.mxu0 %v124
    %v164 = vpop.f32.mrf.mxu0
    %v165 = vadd.f32 0.0, %v164
    %166 = vmatmul.f32.gmra.mxu0 %v127
    %v167 = vpop.f32.mrf.mxu0
    %v168 = vadd.f32 0.0, %v167
    %169 = vmatmul.f32.gmra.mxu0 %v130
    %v170 = vpop.f32.mrf.mxu0
    %v171 = vadd.f32 0.0, %v170
    %172 = vdwg.mxu0
    %v173 = vld [vmem:[%s3] sm:$0xff]
    %v174 = vld [vmem:[%s3 + $0x8] sm:$0xff]
    %v175 = vld [vmem:[%s3 + $0x10] sm:$0xff]
    %v176 = vld [vmem:[%s3 + $0x18] sm:$0xff]
    %v177 = vld [vmem:[%s3 + $0x20] sm:$0xff]
    %v178 = vld [vmem:[%s3 + $0x28] sm:$0xff]
    %v179 = vld [vmem:[%s3 + $0x30] sm:$0xff]
    %v180 = vld [vmem:[%s3 + $0x38] sm:$0xff]
    %v181 = vld [vmem:[%s3 + $0x40] sm:$0xff]
    %v182 = vld [vmem:[%s3 + $0x48] sm:$0xff]
    %v183 = vld [vmem:[%s3 + $0x50] sm:$0xff]
    %v184 = vld [vmem:[%s3 + $0x58] sm:$0xff]
    %v185 = vld [vmem:[%s5] ss:$2 sm:$0x7]
    %v187 = vperm.slane %v185, 0
    %v188 = vperm.slane %v185, 1
    %v189 = vperm.slane %v185, 2
    %vm193 = vcmask 261120
    %v195 = vsel %vm193, %v150, 0
    %v198 = vsel %vm193, %v153, 0
    %v201 = vsel %vm193, %v156, 0
    %v204 = vsel %vm193, %v159, 0
    %v207 = vsel %vm193, %v162, 0
    %v210 = vsel %vm193, %v165, 0
    %v213 = vsel %vm193, %v168, 0
    %v216 = vsel %vm193, %v171, 0
    %218 = vmatpush.msra.mxu0 0.0
    %219 = vmatpush.msra.mxu0 0.0
    %220 = vmatpush.msra.mxu0 0.0
    %221 = vmatpush.msra.mxu0 0.0
    %222 = vmatpush.msra.mxu0 0.0
    %223 = vmatpush.msra.mxu0 0.0
    %224 = vmatpush.msra.mxu0 0.0
    %225 = vmatpush.msra.mxu0 0.0
    %226 = vmatpush.msra.mxu0 0.0
    %227 = vmatpush.msra.mxu0 0.0
    %228 = vmatpush.msra.mxu0 0.0
    %229 = vmatpush.msra.mxu0 0.0
    %230 = vmatpush.msra.mxu0 %v182
    %231 = vmatpush.msra.mxu0 %v179
    %232 = vmatpush.msra.mxu0 %v176
    %233 = vmatpush.msra.mxu0 %v173
    %234 = vmatmul.f32.gmra.mxu0 %v195
    %v235 = vpop.f32.mrf.mxu0
    %v236 = vadd.f32 %v187, %v235
    %237 = vmatmul.f32.gmra.mxu0 %v198
    %v238 = vpop.f32.mrf.mxu0
    %v239 = vadd.f32 %v187, %v238
    %240 = vmatmul.f32.gmra.mxu0 %v201
    %v241 = vpop.f32.mrf.mxu0
    %v242 = vadd.f32 %v187, %v241
    %243 = vmatmul.f32.gmra.mxu0 %v204
    %v244 = vpop.f32.mrf.mxu0
    %v245 = vadd.f32 %v187, %v244
    %246 = vmatmul.f32.gmra.mxu0 %v207
    %v247 = vpop.f32.mrf.mxu0
    %v248 = vadd.f32 %v187, %v247
    %249 = vmatmul.f32.gmra.mxu0 %v210
    %v250 = vpop.f32.mrf.mxu0
    %v251 = vadd.f32 %v187, %v250
    %252 = vmatmul.f32.gmra.mxu0 %v213
    %v253 = vpop.f32.mrf.mxu0
    %v254 = vadd.f32 %v187, %v253
    %255 = vmatmul.f32.gmra.mxu0 %v216
    %v256 = vpop.f32.mrf.mxu0
    %v257 = vadd.f32 %v187, %v256
    %258 = vdwg.mxu0
    %259 = vmatpush.msra.mxu0 0.0
    %260 = vmatpush.msra.mxu0 0.0
    %261 = vmatpush.msra.mxu0 0.0
    %262 = vmatpush.msra.mxu0 0.0
    %263 = vmatpush.msra.mxu0 0.0
    %264 = vmatpush.msra.mxu0 0.0
    %265 = vmatpush.msra.mxu0 0.0
    %266 = vmatpush.msra.mxu0 0.0
    %267 = vmatpush.msra.mxu0 0.0
    %268 = vmatpush.msra.mxu0 0.0
    %269 = vmatpush.msra.mxu0 0.0
    %270 = vmatpush.msra.mxu0 0.0
    %271 = vmatpush.msra.mxu0 %v183
    %272 = vmatpush.msra.mxu0 %v180
    %273 = vmatpush.msra.mxu0 %v177
    %274 = vmatpush.msra.mxu0 %v174
    %275 = vmatmul.f32.gmra.mxu0 %v195
    %v276 = vpop.f32.mrf.mxu0
    %v277 = vadd.f32 %v188, %v276
    %278 = vmatmul.f32.gmra.mxu0 %v198
    %v279 = vpop.f32.mrf.mxu0
    %v280 = vadd.f32 %v188, %v279
    %281 = vmatmul.f32.gmra.mxu0 %v201
    %v282 = vpop.f32.mrf.mxu0
    %v283 = vadd.f32 %v188, %v282
    %284 = vmatmul.f32.gmra.mxu0 %v204
    %v285 = vpop.f32.mrf.mxu0
    %v286 = vadd.f32 %v188, %v285
    %287 = vmatmul.f32.gmra.mxu0 %v207
    %v288 = vpop.f32.mrf.mxu0
    %v289 = vadd.f32 %v188, %v288
    %290 = vmatmul.f32.gmra.mxu0 %v210
    %v291 = vpop.f32.mrf.mxu0
    %v292 = vadd.f32 %v188, %v291
    %293 = vmatmul.f32.gmra.mxu0 %v213
    %v294 = vpop.f32.mrf.mxu0
    %v295 = vadd.f32 %v188, %v294
    %296 = vmatmul.f32.gmra.mxu0 %v216
    %v297 = vpop.f32.mrf.mxu0
    %v298 = vadd.f32 %v188, %v297
    %299 = vdwg.mxu0
    %300 = vmatpush.msra.mxu0 0.0
    %301 = vmatpush.msra.mxu0 0.0
    %302 = vmatpush.msra.mxu0 0.0
    %303 = vmatpush.msra.mxu0 0.0
    %304 = vmatpush.msra.mxu0 0.0
    %305 = vmatpush.msra.mxu0 0.0
    %306 = vmatpush.msra.mxu0 0.0
    %307 = vmatpush.msra.mxu0 0.0
    %308 = vmatpush.msra.mxu0 0.0
    %309 = vmatpush.msra.mxu0 0.0
    %310 = vmatpush.msra.mxu0 0.0
    %311 = vmatpush.msra.mxu0 0.0
    %312 = vmatpush.msra.mxu0 %v184
    %313 = vmatpush.msra.mxu0 %v181
    %314 = vmatpush.msra.mxu0 %v178
    %315 = vmatpush.msra.mxu0 %v175
    %316 = vmatmul.f32.gmra.mxu0 %v195
    %v317 = vpop.f32.mrf.mxu0
    %v318 = vadd.f32 %v189, %v317
    %319 = vmatmul.f32.gmra.mxu0 %v198
    %v320 = vpop.f32.mrf.mxu0
    %v321 = vadd.f32 %v189, %v320
    %322 = vmatmul.f32.gmra.mxu0 %v201
    %v323 = vpop.f32.mrf.mxu0
    %v324 = vadd.f32 %v189, %v323
    %325 = vmatmul.f32.gmra.mxu0 %v204
    %v326 = vpop.f32.mrf.mxu0
    %v327 = vadd.f32 %v189, %v326
    %328 = vmatmul.f32.gmra.mxu0 %v207
    %v329 = vpop.f32.mrf.mxu0
    %v330 = vadd.f32 %v189, %v329
    %331 = vmatmul.f32.gmra.mxu0 %v210
    %v332 = vpop.f32.mrf.mxu0
    %v333 = vadd.f32 %v189, %v332
    %334 = vmatmul.f32.gmra.mxu0 %v213
    %v335 = vpop.f32.mrf.mxu0
    %v336 = vadd.f32 %v189, %v335
    %337 = vmatmul.f32.gmra.mxu0 %v216
    %v338 = vpop.f32.mrf.mxu0
    %v339 = vadd.f32 %v189, %v338
    %340 = vdwg.mxu0
    %v341 = vld [vmem:[#allocation2] sm:$0xff]
    %v342 = vld [vmem:[#allocation2 + $0x8] sm:$0xff]
    %v343 = vld [vmem:[#allocation2 + $0x10] sm:$0xff]
    %v344 = vld [vmem:[#allocation2 + $0x18] sm:$0xff]
    %v345 = vld [vmem:[#allocation2 + $0x20] sm:$0xff]
    %v346 = vld [vmem:[#allocation2 + $0x28] sm:$0xff]
    %v347 = vld [vmem:[#allocation2 + $0x30] sm:$0xff]
    %v348 = vld [vmem:[#allocation2 + $0x38] sm:$0xff]
    %v349 = vld [vmem:[#allocation2 + $0x40] sm:$0xff]
    %v350 = vld [vmem:[#allocation2 + $0x48] sm:$0xff]
    %v351 = vld [vmem:[#allocation2 + $0x50] sm:$0xff]
    %v352 = vld [vmem:[#allocation2 + $0x58] sm:$0xff]
    %v353 = vld [vmem:[#allocation2 + $0x60] sm:$0xff]
    %v354 = vld [vmem:[#allocation2 + $0x68] sm:$0xff]
    %v355 = vld [vmem:[#allocation2 + $0x70] sm:$0xff]
    %v356 = vld [vmem:[#allocation2 + $0x78] sm:$0xff]
    %v357 = vld [vmem:[#allocation2 + $0x80] sm:$0xff]
    %v358 = vld [vmem:[#allocation2 + $0x88] sm:$0xff]
    %v359 = vld [vmem:[#allocation2 + $0x90] sm:$0xff]
    %v360 = vld [vmem:[#allocation2 + $0x98] sm:$0xff]
    %v361 = vld [vmem:[#allocation2 + $0xa0] sm:$0xff]
    %v362 = vld [vmem:[#allocation2 + $0xa8] sm:$0xff]
    %v363 = vld [vmem:[#allocation2 + $0xb0] sm:$0xff]
    %v364 = vld [vmem:[#allocation2 + $0xb8] sm:$0xff]
    %v365 = vld [vmem:[#allocation2 + $0xc0] sm:$0xff]
    %v366 = vld [vmem:[#allocation2 + $0xc8] sm:$0xff]
    %v367 = vld [vmem:[#allocation2 + $0xd0] sm:$0xff]
    %v368 = vld [vmem:[#allocation2 + $0xd8] sm:$0xff]
    %v369 = vld [vmem:[#allocation2 + $0xe0] sm:$0xff]
    %v370 = vld [vmem:[#allocation2 + $0xe8] sm:$0xff]
    %v371 = vld [vmem:[#allocation2 + $0xf0] sm:$0xff]
    %v372 = vld [vmem:[#allocation2 + $0xf8] sm:$0xff]
    %v373 = vld [vmem:[#allocation2 + $0x100] sm:$0xff]
    %v374 = vld [vmem:[#allocation2 + $0x108] sm:$0xff]
    %v375 = vld [vmem:[#allocation2 + $0x110] sm:$0xff]
    %v376 = vld [vmem:[#allocation2 + $0x118] sm:$0xff]
    %v377 = vld [vmem:[#allocation2 + $0x120] sm:$0xff]
    %v378 = vld [vmem:[#allocation2 + $0x128] sm:$0xff]
    %v379 = vld [vmem:[#allocation2 + $0x130] sm:$0xff]
    %v380 = vld [vmem:[#allocation2 + $0x138] sm:$0xff]
    %v381 = vld [vmem:[#allocation2 + $0x140] sm:$0xff]
    %v382 = vld [vmem:[#allocation2 + $0x148] sm:$0xff]
    %v383 = vld [vmem:[#allocation2 + $0x150] sm:$0xff]
    %v384 = vld [vmem:[#allocation2 + $0x158] sm:$0xff]
    %v385 = vld [vmem:[#allocation2 + $0x160] sm:$0xff]
    %v386 = vld [vmem:[#allocation2 + $0x168] sm:$0xff]
    %v387 = vld [vmem:[#allocation2 + $0x170] sm:$0xff]
    %v388 = vld [vmem:[#allocation2 + $0x178] sm:$0xff]
    %v389 = vld [vmem:[%s5 + $0x5] sm:$0x1]
    %v390 = vperm.slane %v389, 0
    %v391 = vld [vmem:[%s2] sm:$0xff]
    %392 = vmatpush.msra.mxu0 %v386
    %393 = vmatpush.msra.mxu0 %v383
    %394 = vmatpush.msra.mxu0 %v380
    %395 = vmatpush.msra.mxu0 %v377
    %396 = vmatpush.msra.mxu0 %v374
    %397 = vmatpush.msra.mxu0 %v371
    %398 = vmatpush.msra.mxu0 %v368
    %399 = vmatpush.msra.mxu0 %v365
    %400 = vmatpush.msra.mxu0 %v362
    %401 = vmatpush.msra.mxu0 %v359
    %402 = vmatpush.msra.mxu0 %v356
    %403 = vmatpush.msra.mxu0 %v353
    %404 = vmatpush.msra.mxu0 %v350
    %405 = vmatpush.msra.mxu0 %v347
    %406 = vmatpush.msra.mxu0 %v344
    %407 = vmatpush.msra.mxu0 %v341
    %408 = vmatmul.f32.gmra.mxu0 %v391
    %v409 = vpop.f32.mrf.mxu0
    %v410 = vadd.f32 0.0, %v409
    %411 = vdwg.mxu0
    %412 = vmatpush.msra.mxu0 %v387
    %413 = vmatpush.msra.mxu0 %v384
    %414 = vmatpush.msra.mxu0 %v381
    %415 = vmatpush.msra.mxu0 %v378
    %416 = vmatpush.msra.mxu0 %v375
    %417 = vmatpush.msra.mxu0 %v372
    %418 = vmatpush.msra.mxu0 %v369
    %419 = vmatpush.msra.mxu0 %v366
    %420 = vmatpush.msra.mxu0 %v363
    %421 = vmatpush.msra.mxu0 %v360
    %422 = vmatpush.msra.mxu0 %v357
    %423 = vmatpush.msra.mxu0 %v354
    %424 = vmatpush.msra.mxu0 %v351
    %425 = vmatpush.msra.mxu0 %v348
    %426 = vmatpush.msra.mxu0 %v345
    %427 = vmatpush.msra.mxu0 %v342
    %428 = vmatmul.f32.gmra.mxu0 %v391
    %v429 = vpop.f32.mrf.mxu0
    %v430 = vadd.f32 0.0, %v429
    %431 = vdwg.mxu0
    %432 = vmatpush.msra.mxu0 %v388
    %433 = vmatpush.msra.mxu0 %v385
    %434 = vmatpush.msra.mxu0 %v382
    %435 = vmatpush.msra.mxu0 %v379
    %436 = vmatpush.msra.mxu0 %v376
    %437 = vmatpush.msra.mxu0 %v373
    %438 = vmatpush.msra.mxu0 %v370
    %439 = vmatpush.msra.mxu0 %v367
    %440 = vmatpush.msra.mxu0 %v364
    %441 = vmatpush.msra.mxu0 %v361
    %442 = vmatpush.msra.mxu0 %v358
    %443 = vmatpush.msra.mxu0 %v355
    %444 = vmatpush.msra.mxu0 %v352
    %445 = vmatpush.msra.mxu0 %v349
    %446 = vmatpush.msra.mxu0 %v346
    %447 = vmatpush.msra.mxu0 %v343
    %448 = vmatmul.f32.gmra.mxu0 %v391
    %v449 = vpop.f32.mrf.mxu0
    %v450 = vadd.f32 0.0, %v449
    %451 = vdwg.mxu0
    %v452 = vadd.f32 %v236, %v410
    %v453 = vxor.u32 %v452, 2147483648
    %v454 = vmul.f32 %v453, 1.442695
    %v455 = vpow.pop %v454
    %v456 = vadd.f32 %v455, 1.0
    %v457 = vrcp.pop %v456
    %v458 = vmul.f32 %v456, %v457
    %v459 = vsub.f32 1.0, %v458
    %v460 = vmul.f32 %v457, %v459
    %v461 = vadd.f32 %v457, %v460
    %vm462 = vweird.f32 %v456
    %vm463 = vweird.f32 %v457
    %vm464 = vmor %vm462, %vm463
    %v465 = vsel %vm464, %v457, %v461
    %v466 = vand.u32 2147483647, %v456
    %vm467 = vcmp.eq.f32.partialorder %v466, 8.507059e+37
    %v468 = vand.u32 %v456, 2147483648
    %v469 = vor.u32 1.1754944e-38, %v468
    %v470 = vsel %vm467, %v469, %v465
    %v471 = vmul.f32 1.0, %v470
    %v472 = vadd.f32 %v277, %v430
    %v473 = vxor.u32 %v472, 2147483648
    %v474 = vmul.f32 %v473, 1.442695
    %v475 = vpow.pop %v474
    %v476 = vadd.f32 %v475, 1.0
    %v477 = vrcp.pop %v476
    %v478 = vmul.f32 %v476, %v477
    %v479 = vsub.f32 1.0, %v478
    %v480 = vmul.f32 %v477, %v479
    %v481 = vadd.f32 %v477, %v480
    %vm482 = vweird.f32 %v476
    %vm483 = vweird.f32 %v477
    %vm484 = vmor %vm482, %vm483
    %v485 = vsel %vm484, %v477, %v481
    %v486 = vand.u32 2147483647, %v476
    %vm487 = vcmp.eq.f32.partialorder %v486, 8.507059e+37
    %v488 = vand.u32 %v476, 2147483648
    %v489 = vor.u32 1.1754944e-38, %v488
    %v490 = vsel %vm487, %v489, %v485
    %v491 = vmul.f32 1.0, %v490
    %v492 = vadd.f32 %v450, %v390
    %v493 = vmul.f32 %v471, %v492
    %v494 = vadd.f32 %v318, %v493
    %v495 = vtanh.pop %v494
    %v496 = vsub.f32 %v391, %v495
    %v497 = vmul.f32 %v491, %v496
    %v498 = vadd.f32 %v495, %v497
    %499 = vmatpush.msra.mxu0 %v386
    %500 = vmatpush.msra.mxu0 %v383
    %501 = vmatpush.msra.mxu0 %v380
    %502 = vmatpush.msra.mxu0 %v377
    %503 = vmatpush.msra.mxu0 %v374
    %504 = vmatpush.msra.mxu0 %v371
    %505 = vmatpush.msra.mxu0 %v368
    %506 = vmatpush.msra.mxu0 %v365
    %507 = vmatpush.msra.mxu0 %v362
    %508 = vmatpush.msra.mxu0 %v359
    %509 = vmatpush.msra.mxu0 %v356
    %510 = vmatpush.msra.mxu0 %v353
    %511 = vmatpush.msra.mxu0 %v350
    %512 = vmatpush.msra.mxu0 %v347
    %513 = vmatpush.msra.mxu0 %v344
    %514 = vmatpush.msra.mxu0 %v341
    %515 = vmatmul.f32.gmra.mxu0 %v498
    %v516 = vpop.f32.mrf.mxu0
    %v517 = vadd.f32 0.0, %v516
    %518 = vdwg.mxu0
    %519 = vmatpush.msra.mxu0 %v387
    %520 = vmatpush.msra.mxu0 %v384
    %521 = vmatpush.msra.mxu0 %v381
    %522 = vmatpush.msra.mxu0 %v378
    %523 = vmatpush.msra.mxu0 %v375
    %524 = vmatpush.msra.mxu0 %v372
    %525 = vmatpush.msra.mxu0 %v369
    %526 = vmatpush.msra.mxu0 %v366
    %527 = vmatpush.msra.mxu0 %v363
    %528 = vmatpush.msra.mxu0 %v360
    %529 = vmatpush.msra.mxu0 %v357
    %530 = vmatpush.msra.mxu0 %v354
    %531 = vmatpush.msra.mxu0 %v351
    %532 = vmatpush.msra.mxu0 %v348
    %533 = vmatpush.msra.mxu0 %v345
    %534 = vmatpush.msra.mxu0 %v342
    %535 = vmatmul.f32.gmra.mxu0 %v498
    %v536 = vpop.f32.mrf.mxu0
    %v537 = vadd.f32 0.0, %v536
    %538 = vdwg.mxu0
    %539 = vmatpush.msra.mxu0 %v388
    %540 = vmatpush.msra.mxu0 %v385
    %541 = vmatpush.msra.mxu0 %v382
    %542 = vmatpush.msra.mxu0 %v379
    %543 = vmatpush.msra.mxu0 %v376
    %544 = vmatpush.msra.mxu0 %v373
    %545 = vmatpush.msra.mxu0 %v370
    %546 = vmatpush.msra.mxu0 %v367
    %547 = vmatpush.msra.mxu0 %v364
    %548 = vmatpush.msra.mxu0 %v361
    %549 = vmatpush.msra.mxu0 %v358
    %550 = vmatpush.msra.mxu0 %v355
    %551 = vmatpush.msra.mxu0 %v352
    %552 = vmatpush.msra.mxu0 %v349
    %553 = vmatpush.msra.mxu0 %v346
    %554 = vmatpush.msra.mxu0 %v343
    %555 = vmatmul.f32.gmra.mxu0 %v498
    %v556 = vpop.f32.mrf.mxu0
    %v557 = vadd.f32 0.0, %v556
    %558 = vdwg.mxu0
    %v559 = vadd.f32 %v239, %v517
    %v560 = vxor.u32 %v559, 2147483648
    %v561 = vmul.f32 %v560, 1.442695
    %v562 = vpow.pop %v561
    %v563 = vadd.f32 %v562, 1.0
    %v564 = vrcp.pop %v563
    %v565 = vmul.f32 %v563, %v564
    %v566 = vsub.f32 1.0, %v565
    %v567 = vmul.f32 %v564, %v566
    %v568 = vadd.f32 %v564, %v567
    %vm569 = vweird.f32 %v563
    %vm570 = vweird.f32 %v564
    %vm571 = vmor %vm569, %vm570
    %v572 = vsel %vm571, %v564, %v568
    %v573 = vand.u32 2147483647, %v563
    %vm574 = vcmp.eq.f32.partialorder %v573, 8.507059e+37
    %v575 = vand.u32 %v563, 2147483648
    %v576 = vor.u32 1.1754944e-38, %v575
    %v577 = vsel %vm574, %v576, %v572
    %v578 = vmul.f32 1.0, %v577
    %v579 = vadd.f32 %v280, %v537
    %v580 = vxor.u32 %v579, 2147483648
    %v581 = vmul.f32 %v580, 1.442695
    %v582 = vpow.pop %v581
    %v583 = vadd.f32 %v582, 1.0
    %v584 = vrcp.pop %v583
    %v585 = vmul.f32 %v583, %v584
    %v586 = vsub.f32 1.0, %v585
    %v587 = vmul.f32 %v584, %v586
    %v588 = vadd.f32 %v584, %v587
    %vm589 = vweird.f32 %v583
    %vm590 = vweird.f32 %v584
    %vm591 = vmor %vm589, %vm590
    %v592 = vsel %vm591, %v584, %v588
    %v593 = vand.u32 2147483647, %v583
    %vm594 = vcmp.eq.f32.partialorder %v593, 8.507059e+37
    %v595 = vand.u32 %v583, 2147483648
    %v596 = vor.u32 1.1754944e-38, %v595
    %v597 = vsel %vm594, %v596, %v592
    %v598 = vmul.f32 1.0, %v597
    %v599 = vadd.f32 %v557, %v390
    %v600 = vmul.f32 %v578, %v599
    %v601 = vadd.f32 %v321, %v600
    %v602 = vtanh.pop %v601
    %v603 = vsub.f32 %v498, %v602
    %v604 = vmul.f32 %v598, %v603
    %v605 = vadd.f32 %v602, %v604
    %606 = vmatpush.msra.mxu0 %v386
    %607 = vmatpush.msra.mxu0 %v383
    %608 = vmatpush.msra.mxu0 %v380
    %609 = vmatpush.msra.mxu0 %v377
    %610 = vmatpush.msra.mxu0 %v374
    %611 = vmatpush.msra.mxu0 %v371
    %612 = vmatpush.msra.mxu0 %v368
    %613 = vmatpush.msra.mxu0 %v365
    %614 = vmatpush.msra.mxu0 %v362
    %615 = vmatpush.msra.mxu0 %v359
    %616 = vmatpush.msra.mxu0 %v356
    %617 = vmatpush.msra.mxu0 %v353
    %618 = vmatpush.msra.mxu0 %v350
    %619 = vmatpush.msra.mxu0 %v347
    %620 = vmatpush.msra.mxu0 %v344
    %621 = vmatpush.msra.mxu0 %v341
    %622 = vmatmul.f32.gmra.mxu0 %v605
    %v623 = vpop.f32.mrf.mxu0
    %v624 = vadd.f32 0.0, %v623
    %625 = vdwg.mxu0
    %626 = vmatpush.msra.mxu0 %v387
    %627 = vmatpush.msra.mxu0 %v384
    %628 = vmatpush.msra.mxu0 %v381
    %629 = vmatpush.msra.mxu0 %v378
    %630 = vmatpush.msra.mxu0 %v375
    %631 = vmatpush.msra.mxu0 %v372
    %632 = vmatpush.msra.mxu0 %v369
    %633 = vmatpush.msra.mxu0 %v366
    %634 = vmatpush.msra.mxu0 %v363
    %635 = vmatpush.msra.mxu0 %v360
    %636 = vmatpush.msra.mxu0 %v357
    %637 = vmatpush.msra.mxu0 %v354
    %638 = vmatpush.msra.mxu0 %v351
    %639 = vmatpush.msra.mxu0 %v348
    %640 = vmatpush.msra.mxu0 %v345
    %641 = vmatpush.msra.mxu0 %v342
    %642 = vmatmul.f32.gmra.mxu0 %v605
    %v643 = vpop.f32.mrf.mxu0
    %v644 = vadd.f32 0.0, %v643
    %645 = vdwg.mxu0
    %646 = vmatpush.msra.mxu0 %v388
    %647 = vmatpush.msra.mxu0 %v385
    %648 = vmatpush.msra.mxu0 %v382
    %649 = vmatpush.msra.mxu0 %v379
    %650 = vmatpush.msra.mxu0 %v376
    %651 = vmatpush.msra.mxu0 %v373
    %652 = vmatpush.msra.mxu0 %v370
    %653 = vmatpush.msra.mxu0 %v367
    %654 = vmatpush.msra.mxu0 %v364
    %655 = vmatpush.msra.mxu0 %v361
    %656 = vmatpush.msra.mxu0 %v358
    %657 = vmatpush.msra.mxu0 %v355
    %658 = vmatpush.msra.mxu0 %v352
    %659 = vmatpush.msra.mxu0 %v349
    %660 = vmatpush.msra.mxu0 %v346
    %661 = vmatpush.msra.mxu0 %v343
    %662 = vmatmul.f32.gmra.mxu0 %v605
    %v663 = vpop.f32.mrf.mxu0
    %v664 = vadd.f32 0.0, %v663
    %665 = vdwg.mxu0
    %v666 = vadd.f32 %v242, %v624
    %v667 = vxor.u32 %v666, 2147483648
    %v668 = vmul.f32 %v667, 1.442695
    %v669 = vpow.pop %v668
    %v670 = vadd.f32 %v669, 1.0
    %v671 = vrcp.pop %v670
    %v672 = vmul.f32 %v670, %v671
    %v673 = vsub.f32 1.0, %v672
    %v674 = vmul.f32 %v671, %v673
    %v675 = vadd.f32 %v671, %v674
    %vm676 = vweird.f32 %v670
    %vm677 = vweird.f32 %v671
    %vm678 = vmor %vm676, %vm677
    %v679 = vsel %vm678, %v671, %v675
    %v680 = vand.u32 2147483647, %v670
    %vm681 = vcmp.eq.f32.partialorder %v680, 8.507059e+37
    %v682 = vand.u32 %v670, 2147483648
    %v683 = vor.u32 1.1754944e-38, %v682
    %v684 = vsel %vm681, %v683, %v679
    %v685 = vmul.f32 1.0, %v684
    %v686 = vadd.f32 %v283, %v644
    %v687 = vxor.u32 %v686, 2147483648
    %v688 = vmul.f32 %v687, 1.442695
    %v689 = vpow.pop %v688
    %v690 = vadd.f32 %v689, 1.0
    %v691 = vrcp.pop %v690
    %v692 = vmul.f32 %v690, %v691
    %v693 = vsub.f32 1.0, %v692
    %v694 = vmul.f32 %v691, %v693
    %v695 = vadd.f32 %v691, %v694
    %vm696 = vweird.f32 %v690
    %vm697 = vweird.f32 %v691
    %vm698 = vmor %vm696, %vm697
    %v699 = vsel %vm698, %v691, %v695
    %v700 = vand.u32 2147483647, %v690
    %vm701 = vcmp.eq.f32.partialorder %v700, 8.507059e+37
    %v702 = vand.u32 %v690, 2147483648
    %v703 = vor.u32 1.1754944e-38, %v702
    %v704 = vsel %vm701, %v703, %v699
    %v705 = vmul.f32 1.0, %v704
    %v706 = vadd.f32 %v664, %v390
    %v707 = vmul.f32 %v685, %v706
    %v708 = vadd.f32 %v324, %v707
    %v709 = vtanh.pop %v708
    %v710 = vsub.f32 %v605, %v709
    %v711 = vmul.f32 %v705, %v710
    %v712 = vadd.f32 %v709, %v711
    %713 = vmatpush.msra.mxu0 %v386
    %714 = vmatpush.msra.mxu0 %v383
    %715 = vmatpush.msra.mxu0 %v380
    %716 = vmatpush.msra.mxu0 %v377
    %717 = vmatpush.msra.mxu0 %v374
    %718 = vmatpush.msra.mxu0 %v371
    %719 = vmatpush.msra.mxu0 %v368
    %720 = vmatpush.msra.mxu0 %v365
    %721 = vmatpush.msra.mxu0 %v362
    %722 = vmatpush.msra.mxu0 %v359
    %723 = vmatpush.msra.mxu0 %v356
    %724 = vmatpush.msra.mxu0 %v353
    %725 = vmatpush.msra.mxu0 %v350
    %726 = vmatpush.msra.mxu0 %v347
    %727 = vmatpush.msra.mxu0 %v344
    %728 = vmatpush.msra.mxu0 %v341
    %729 = vmatmul.f32.gmra.mxu0 %v712
    %v730 = vpop.f32.mrf.mxu0
    %v731 = vadd.f32 0.0, %v730
    %732 = vdwg.mxu0
    %733 = vmatpush.msra.mxu0 %v387
    %734 = vmatpush.msra.mxu0 %v384
    %735 = vmatpush.msra.mxu0 %v381
    %736 = vmatpush.msra.mxu0 %v378
    %737 = vmatpush.msra.mxu0 %v375
    %738 = vmatpush.msra.mxu0 %v372
    %739 = vmatpush.msra.mxu0 %v369
    %740 = vmatpush.msra.mxu0 %v366
    %741 = vmatpush.msra.mxu0 %v363
    %742 = vmatpush.msra.mxu0 %v360
    %743 = vmatpush.msra.mxu0 %v357
    %744 = vmatpush.msra.mxu0 %v354
    %745 = vmatpush.msra.mxu0 %v351
    %746 = vmatpush.msra.mxu0 %v348
    %747 = vmatpush.msra.mxu0 %v345
    %748 = vmatpush.msra.mxu0 %v342
    %749 = vmatmul.f32.gmra.mxu0 %v712
    %v750 = vpop.f32.mrf.mxu0
    %v751 = vadd.f32 0.0, %v750
    %752 = vdwg.mxu0
    %753 = vmatpush.msra.mxu0 %v388
    %754 = vmatpush.msra.mxu0 %v385
    %755 = vmatpush.msra.mxu0 %v382
    %756 = vmatpush.msra.mxu0 %v379
    %757 = vmatpush.msra.mxu0 %v376
    %758 = vmatpush.msra.mxu0 %v373
    %759 = vmatpush.msra.mxu0 %v370
    %760 = vmatpush.msra.mxu0 %v367
    %761 = vmatpush.msra.mxu0 %v364
    %762 = vmatpush.msra.mxu0 %v361
    %763 = vmatpush.msra.mxu0 %v358
    %764 = vmatpush.msra.mxu0 %v355
    %765 = vmatpush.msra.mxu0 %v352
    %766 = vmatpush.msra.mxu0 %v349
    %767 = vmatpush.msra.mxu0 %v346
    %768 = vmatpush.msra.mxu0 %v343
    %769 = vmatmul.f32.gmra.mxu0 %v712
    %v770 = vpop.f32.mrf.mxu0
    %v771 = vadd.f32 0.0, %v770
    %772 = vdwg.mxu0
    %v773 = vadd.f32 %v245, %v731
    %v774 = vxor.u32 %v773, 2147483648
    %v775 = vmul.f32 %v774, 1.442695
    %v776 = vpow.pop %v775
    %v777 = vadd.f32 %v776, 1.0
    %v778 = vrcp.pop %v777
    %v779 = vmul.f32 %v777, %v778
    %v780 = vsub.f32 1.0, %v779
    %v781 = vmul.f32 %v778, %v780
    %v782 = vadd.f32 %v778, %v781
    %vm783 = vweird.f32 %v777
    %vm784 = vweird.f32 %v778
    %vm785 = vmor %vm783, %vm784
    %v786 = vsel %vm785, %v778, %v782
    %v787 = vand.u32 2147483647, %v777
    %vm788 = vcmp.eq.f32.partialorder %v787, 8.507059e+37
    %v789 = vand.u32 %v777, 2147483648
    %v790 = vor.u32 1.1754944e-38, %v789
    %v791 = vsel %vm788, %v790, %v786
    %v792 = vmul.f32 1.0, %v791
    %v793 = vadd.f32 %v286, %v751
    %v794 = vxor.u32 %v793, 2147483648
    %v795 = vmul.f32 %v794, 1.442695
    %v796 = vpow.pop %v795
    %v797 = vadd.f32 %v796, 1.0
    %v798 = vrcp.pop %v797
    %v799 = vmul.f32 %v797, %v798
    %v800 = vsub.f32 1.0, %v799
    %v801 = vmul.f32 %v798, %v800
    %v802 = vadd.f32 %v798, %v801
    %vm803 = vweird.f32 %v797
    %vm804 = vweird.f32 %v798
    %vm805 = vmor %vm803, %vm804
    %v806 = vsel %vm805, %v798, %v802
    %v807 = vand.u32 2147483647, %v797
    %vm808 = vcmp.eq.f32.partialorder %v807, 8.507059e+37
    %v809 = vand.u32 %v797, 2147483648
    %v810 = vor.u32 1.1754944e-38, %v809
    %v811 = vsel %vm808, %v810, %v806
    %v812 = vmul.f32 1.0, %v811
    %v813 = vadd.f32 %v771, %v390
    %v814 = vmul.f32 %v792, %v813
    %v815 = vadd.f32 %v327, %v814
    %v816 = vtanh.pop %v815
    %v817 = vsub.f32 %v712, %v816
    %v818 = vmul.f32 %v812, %v817
    %v819 = vadd.f32 %v816, %v818
    %820 = vmatpush.msra.mxu0 %v386
    %821 = vmatpush.msra.mxu0 %v383
    %822 = vmatpush.msra.mxu0 %v380
    %823 = vmatpush.msra.mxu0 %v377
    %824 = vmatpush.msra.mxu0 %v374
    %825 = vmatpush.msra.mxu0 %v371
    %826 = vmatpush.msra.mxu0 %v368
    %827 = vmatpush.msra.mxu0 %v365
    %828 = vmatpush.msra.mxu0 %v362
    %829 = vmatpush.msra.mxu0 %v359
    %830 = vmatpush.msra.mxu0 %v356
    %831 = vmatpush.msra.mxu0 %v353
    %832 = vmatpush.msra.mxu0 %v350
    %833 = vmatpush.msra.mxu0 %v347
    %834 = vmatpush.msra.mxu0 %v344
    %835 = vmatpush.msra.mxu0 %v341
    %836 = vmatmul.f32.gmra.mxu0 %v819
    %v837 = vpop.f32.mrf.mxu0
    %v838 = vadd.f32 0.0, %v837
    %839 = vdwg.mxu0
    %840 = vmatpush.msra.mxu0 %v387
    %841 = vmatpush.msra.mxu0 %v384
    %842 = vmatpush.msra.mxu0 %v381
    %843 = vmatpush.msra.mxu0 %v378
    %844 = vmatpush.msra.mxu0 %v375
    %845 = vmatpush.msra.mxu0 %v372
    %846 = vmatpush.msra.mxu0 %v369
    %847 = vmatpush.msra.mxu0 %v366
    %848 = vmatpush.msra.mxu0 %v363
    %849 = vmatpush.msra.mxu0 %v360
    %850 = vmatpush.msra.mxu0 %v357
    %851 = vmatpush.msra.mxu0 %v354
    %852 = vmatpush.msra.mxu0 %v351
    %853 = vmatpush.msra.mxu0 %v348
    %854 = vmatpush.msra.mxu0 %v345
    %855 = vmatpush.msra.mxu0 %v342
    %856 = vmatmul.f32.gmra.mxu0 %v819
    %v857 = vpop.f32.mrf.mxu0
    %v858 = vadd.f32 0.0, %v857
    %859 = vdwg.mxu0
    %860 = vmatpush.msra.mxu0 %v388
    %861 = vmatpush.msra.mxu0 %v385
    %862 = vmatpush.msra.mxu0 %v382
    %863 = vmatpush.msra.mxu0 %v379
    %864 = vmatpush.msra.mxu0 %v376
    %865 = vmatpush.msra.mxu0 %v373
    %866 = vmatpush.msra.mxu0 %v370
    %867 = vmatpush.msra.mxu0 %v367
    %868 = vmatpush.msra.mxu0 %v364
    %869 = vmatpush.msra.mxu0 %v361
    %870 = vmatpush.msra.mxu0 %v358
    %871 = vmatpush.msra.mxu0 %v355
    %872 = vmatpush.msra.mxu0 %v352
    %873 = vmatpush.msra.mxu0 %v349
    %874 = vmatpush.msra.mxu0 %v346
    %875 = vmatpush.msra.mxu0 %v343
    %876 = vmatmul.f32.gmra.mxu0 %v819
    %v877 = vpop.f32.mrf.mxu0
    %v878 = vadd.f32 0.0, %v877
    %879 = vdwg.mxu0
    %v880 = vadd.f32 %v248, %v838
    %v881 = vxor.u32 %v880, 2147483648
    %v882 = vmul.f32 %v881, 1.442695
    %v883 = vpow.pop %v882
    %v884 = vadd.f32 %v883, 1.0
    %v885 = vrcp.pop %v884
    %v886 = vmul.f32 %v884, %v885
    %v887 = vsub.f32 1.0, %v886
    %v888 = vmul.f32 %v885, %v887
    %v889 = vadd.f32 %v885, %v888
    %vm890 = vweird.f32 %v884
    %vm891 = vweird.f32 %v885
    %vm892 = vmor %vm890, %vm891
    %v893 = vsel %vm892, %v885, %v889
    %v894 = vand.u32 2147483647, %v884
    %vm895 = vcmp.eq.f32.partialorder %v894, 8.507059e+37
    %v896 = vand.u32 %v884, 2147483648
    %v897 = vor.u32 1.1754944e-38, %v896
    %v898 = vsel %vm895, %v897, %v893
    %v899 = vmul.f32 1.0, %v898
    %v900 = vadd.f32 %v289, %v858
    %v901 = vxor.u32 %v900, 2147483648
    %v902 = vmul.f32 %v901, 1.442695
    %v903 = vpow.pop %v902
    %v904 = vadd.f32 %v903, 1.0
    %v905 = vrcp.pop %v904
    %v906 = vmul.f32 %v904, %v905
    %v907 = vsub.f32 1.0, %v906
    %v908 = vmul.f32 %v905, %v907
    %v909 = vadd.f32 %v905, %v908
    %vm910 = vweird.f32 %v904
    %vm911 = vweird.f32 %v905
    %vm912 = vmor %vm910, %vm911
    %v913 = vsel %vm912, %v905, %v909
    %v914 = vand.u32 2147483647, %v904
    %vm915 = vcmp.eq.f32.partialorder %v914, 8.507059e+37
    %v916 = vand.u32 %v904, 2147483648
    %v917 = vor.u32 1.1754944e-38, %v916
    %v918 = vsel %vm915, %v917, %v913
    %v919 = vmul.f32 1.0, %v918
    %v920 = vadd.f32 %v878, %v390
    %v921 = vmul.f32 %v899, %v920
    %v922 = vadd.f32 %v330, %v921
    %v923 = vtanh.pop %v922
    %v924 = vsub.f32 %v819, %v923
    %v925 = vmul.f32 %v919, %v924
    %v926 = vadd.f32 %v923, %v925
    %927 = vmatpush.msra.mxu0 %v386
    %928 = vmatpush.msra.mxu0 %v383
    %929 = vmatpush.msra.mxu0 %v380
    %930 = vmatpush.msra.mxu0 %v377
    %931 = vmatpush.msra.mxu0 %v374
    %932 = vmatpush.msra.mxu0 %v371
    %933 = vmatpush.msra.mxu0 %v368
    %934 = vmatpush.msra.mxu0 %v365
    %935 = vmatpush.msra.mxu0 %v362
    %936 = vmatpush.msra.mxu0 %v359
    %937 = vmatpush.msra.mxu0 %v356
    %938 = vmatpush.msra.mxu0 %v353
    %939 = vmatpush.msra.mxu0 %v350
    %940 = vmatpush.msra.mxu0 %v347
    %941 = vmatpush.msra.mxu0 %v344
    %942 = vmatpush.msra.mxu0 %v341
    %943 = vmatmul.f32.gmra.mxu0 %v926
    %v944 = vpop.f32.mrf.mxu0
    %v945 = vadd.f32 0.0, %v944
    %946 = vdwg.mxu0
    %947 = vmatpush.msra.mxu0 %v387
    %948 = vmatpush.msra.mxu0 %v384
    %949 = vmatpush.msra.mxu0 %v381
    %950 = vmatpush.msra.mxu0 %v378
    %951 = vmatpush.msra.mxu0 %v375
    %952 = vmatpush.msra.mxu0 %v372
    %953 = vmatpush.msra.mxu0 %v369
    %954 = vmatpush.msra.mxu0 %v366
    %955 = vmatpush.msra.mxu0 %v363
    %956 = vmatpush.msra.mxu0 %v360
    %957 = vmatpush.msra.mxu0 %v357
    %958 = vmatpush.msra.mxu0 %v354
    %959 = vmatpush.msra.mxu0 %v351
    %960 = vmatpush.msra.mxu0 %v348
    %961 = vmatpush.msra.mxu0 %v345
    %962 = vmatpush.msra.mxu0 %v342
    %963 = vmatmul.f32.gmra.mxu0 %v926
    %v964 = vpop.f32.mrf.mxu0
    %v965 = vadd.f32 0.0, %v964
    %966 = vdwg.mxu0
    %967 = vmatpush.msra.mxu0 %v388
    %968 = vmatpush.msra.mxu0 %v385
    %969 = vmatpush.msra.mxu0 %v382
    %970 = vmatpush.msra.mxu0 %v379
    %971 = vmatpush.msra.mxu0 %v376
    %972 = vmatpush.msra.mxu0 %v373
    %973 = vmatpush.msra.mxu0 %v370
    %974 = vmatpush.msra.mxu0 %v367
    %975 = vmatpush.msra.mxu0 %v364
    %976 = vmatpush.msra.mxu0 %v361
    %977 = vmatpush.msra.mxu0 %v358
    %978 = vmatpush.msra.mxu0 %v355
    %979 = vmatpush.msra.mxu0 %v352
    %980 = vmatpush.msra.mxu0 %v349
    %981 = vmatpush.msra.mxu0 %v346
    %982 = vmatpush.msra.mxu0 %v343
    %983 = vmatmul.f32.gmra.mxu0 %v926
    %v984 = vpop.f32.mrf.mxu0
    %v985 = vadd.f32 0.0, %v984
    %986 = vdwg.mxu0
    %v987 = vadd.f32 %v251, %v945
    %v988 = vxor.u32 %v987, 2147483648
    %v989 = vmul.f32 %v988, 1.442695
    %v990 = vpow.pop %v989
    %v991 = vadd.f32 %v990, 1.0
    %v992 = vrcp.pop %v991
    %v993 = vmul.f32 %v991, %v992
    %v994 = vsub.f32 1.0, %v993
    %v995 = vmul.f32 %v992, %v994
    %v996 = vadd.f32 %v992, %v995
    %vm997 = vweird.f32 %v991
    %vm998 = vweird.f32 %v992
    %vm999 = vmor %vm997, %vm998
    %v1000 = vsel %vm999, %v992, %v996
    %v1001 = vand.u32 2147483647, %v991
    %vm1002 = vcmp.eq.f32.partialorder %v1001, 8.507059e+37
    %v1003 = vand.u32 %v991, 2147483648
    %v1004 = vor.u32 1.1754944e-38, %v1003
    %v1005 = vsel %vm1002, %v1004, %v1000
    %v1006 = vmul.f32 1.0, %v1005
    %v1007 = vadd.f32 %v292, %v965
    %v1008 = vxor.u32 %v1007, 2147483648
    %v1009 = vmul.f32 %v1008, 1.442695
    %v1010 = vpow.pop %v1009
    %v1011 = vadd.f32 %v1010, 1.0
    %v1012 = vrcp.pop %v1011
    %v1013 = vmul.f32 %v1011, %v1012
    %v1014 = vsub.f32 1.0, %v1013
    %v1015 = vmul.f32 %v1012, %v1014
    %v1016 = vadd.f32 %v1012, %v1015
    %vm1017 = vweird.f32 %v1011
    %vm1018 = vweird.f32 %v1012
    %vm1019 = vmor %vm1017, %vm1018
    %v1020 = vsel %vm1019, %v1012, %v1016
    %v1021 = vand.u32 2147483647, %v1011
    %vm1022 = vcmp.eq.f32.partialorder %v1021, 8.507059e+37
    %v1023 = vand.u32 %v1011, 2147483648
    %v1024 = vor.u32 1.1754944e-38, %v1023
    %v1025 = vsel %vm1022, %v1024, %v1020
    %v1026 = vmul.f32 1.0, %v1025
    %v1027 = vadd.f32 %v985, %v390
    %v1028 = vmul.f32 %v1006, %v1027
    %v1029 = vadd.f32 %v333, %v1028
    %v1030 = vtanh.pop %v1029
    %v1031 = vsub.f32 %v926, %v1030
    %v1032 = vmul.f32 %v1026, %v1031
    %v1033 = vadd.f32 %v1030, %v1032
    %1034 = vmatpush.msra.mxu0 %v386
    %1035 = vmatpush.msra.mxu0 %v383
    %1036 = vmatpush.msra.mxu0 %v380
    %1037 = vmatpush.msra.mxu0 %v377
    %1038 = vmatpush.msra.mxu0 %v374
    %1039 = vmatpush.msra.mxu0 %v371
    %1040 = vmatpush.msra.mxu0 %v368
    %1041 = vmatpush.msra.mxu0 %v365
    %1042 = vmatpush.msra.mxu0 %v362
    %1043 = vmatpush.msra.mxu0 %v359
    %1044 = vmatpush.msra.mxu0 %v356
    %1045 = vmatpush.msra.mxu0 %v353
    %1046 = vmatpush.msra.mxu0 %v350
    %1047 = vmatpush.msra.mxu0 %v347
    %1048 = vmatpush.msra.mxu0 %v344
    %1049 = vmatpush.msra.mxu0 %v341
    %1050 = vmatmul.f32.gmra.mxu0 %v1033
    %v1051 = vpop.f32.mrf.mxu0
    %v1052 = vadd.f32 0.0, %v1051
    %1053 = vdwg.mxu0
    %1054 = vmatpush.msra.mxu0 %v387
    %1055 = vmatpush.msra.mxu0 %v384
    %1056 = vmatpush.msra.mxu0 %v381
    %1057 = vmatpush.msra.mxu0 %v378
    %1058 = vmatpush.msra.mxu0 %v375
    %1059 = vmatpush.msra.mxu0 %v372
    %1060 = vmatpush.msra.mxu0 %v369
    %1061 = vmatpush.msra.mxu0 %v366
    %1062 = vmatpush.msra.mxu0 %v363
    %1063 = vmatpush.msra.mxu0 %v360
    %1064 = vmatpush.msra.mxu0 %v357
    %1065 = vmatpush.msra.mxu0 %v354
    %1066 = vmatpush.msra.mxu0 %v351
    %1067 = vmatpush.msra.mxu0 %v348
    %1068 = vmatpush.msra.mxu0 %v345
    %1069 = vmatpush.msra.mxu0 %v342
    %1070 = vmatmul.f32.gmra.mxu0 %v1033
    %v1071 = vpop.f32.mrf.mxu0
    %v1072 = vadd.f32 0.0, %v1071
    %1073 = vdwg.mxu0
    %1074 = vmatpush.msra.mxu0 %v388
    %1075 = vmatpush.msra.mxu0 %v385
    %1076 = vmatpush.msra.mxu0 %v382
    %1077 = vmatpush.msra.mxu0 %v379
    %1078 = vmatpush.msra.mxu0 %v376
    %1079 = vmatpush.msra.mxu0 %v373
    %1080 = vmatpush.msra.mxu0 %v370
    %1081 = vmatpush.msra.mxu0 %v367
    %1082 = vmatpush.msra.mxu0 %v364
    %1083 = vmatpush.msra.mxu0 %v361
    %1084 = vmatpush.msra.mxu0 %v358
    %1085 = vmatpush.msra.mxu0 %v355
    %1086 = vmatpush.msra.mxu0 %v352
    %1087 = vmatpush.msra.mxu0 %v349
    %1088 = vmatpush.msra.mxu0 %v346
    %1089 = vmatpush.msra.mxu0 %v343
    %1090 = vmatmul.f32.gmra.mxu0 %v1033
    %v1091 = vpop.f32.mrf.mxu0
    %v1092 = vadd.f32 0.0, %v1091
    %1093 = vdwg.mxu0
    %v1094 = vadd.f32 %v254, %v1052
    %v1095 = vxor.u32 %v1094, 2147483648
    %v1096 = vmul.f32 %v1095, 1.442695
    %v1097 = vpow.pop %v1096
    %v1098 = vadd.f32 %v1097, 1.0
    %v1099 = vrcp.pop %v1098
    %v1100 = vmul.f32 %v1098, %v1099
    %v1101 = vsub.f32 1.0, %v1100
    %v1102 = vmul.f32 %v1099, %v1101
    %v1103 = vadd.f32 %v1099, %v1102
    %vm1104 = vweird.f32 %v1098
    %vm1105 = vweird.f32 %v1099
    %vm1106 = vmor %vm1104, %vm1105
    %v1107 = vsel %vm1106, %v1099, %v1103
    %v1108 = vand.u32 2147483647, %v1098
    %vm1109 = vcmp.eq.f32.partialorder %v1108, 8.507059e+37
    %v1110 = vand.u32 %v1098, 2147483648
    %v1111 = vor.u32 1.1754944e-38, %v1110
    %v1112 = vsel %vm1109, %v1111, %v1107
    %v1113 = vmul.f32 1.0, %v1112
    %v1114 = vadd.f32 %v295, %v1072
    %v1115 = vxor.u32 %v1114, 2147483648
    %v1116 = vmul.f32 %v1115, 1.442695
    %v1117 = vpow.pop %v1116
    %v1118 = vadd.f32 %v1117, 1.0
    %v1119 = vrcp.pop %v1118
    %v1120 = vmul.f32 %v1118, %v1119
    %v1121 = vsub.f32 1.0, %v1120
    %v1122 = vmul.f32 %v1119, %v1121
    %v1123 = vadd.f32 %v1119, %v1122
    %vm1124 = vweird.f32 %v1118
    %vm1125 = vweird.f32 %v1119
    %vm1126 = vmor %vm1124, %vm1125
    %v1127 = vsel %vm1126, %v1119, %v1123
    %v1128 = vand.u32 2147483647, %v1118
    %vm1129 = vcmp.eq.f32.partialorder %v1128, 8.507059e+37
    %v1130 = vand.u32 %v1118, 2147483648
    %v1131 = vor.u32 1.1754944e-38, %v1130
    %v1132 = vsel %vm1129, %v1131, %v1127
    %v1133 = vmul.f32 1.0, %v1132
    %v1134 = vadd.f32 %v1092, %v390
    %v1135 = vmul.f32 %v1113, %v1134
    %v1136 = vadd.f32 %v336, %v1135
    %v1137 = vtanh.pop %v1136
    %v1138 = vsub.f32 %v1033, %v1137
    %v1139 = vmul.f32 %v1133, %v1138
    %v1140 = vadd.f32 %v1137, %v1139
    %1141 = vmatpush.msra.mxu0 %v386
    %1142 = vmatpush.msra.mxu0 %v383
    %1143 = vmatpush.msra.mxu0 %v380
    %1144 = vmatpush.msra.mxu0 %v377
    %1145 = vmatpush.msra.mxu0 %v374
    %1146 = vmatpush.msra.mxu0 %v371
    %1147 = vmatpush.msra.mxu0 %v368
    %1148 = vmatpush.msra.mxu0 %v365
    %1149 = vmatpush.msra.mxu0 %v362
    %1150 = vmatpush.msra.mxu0 %v359
    %1151 = vmatpush.msra.mxu0 %v356
    %1152 = vmatpush.msra.mxu0 %v353
    %1153 = vmatpush.msra.mxu0 %v350
    %1154 = vmatpush.msra.mxu0 %v347
    %1155 = vmatpush.msra.mxu0 %v344
    %1156 = vmatpush.msra.mxu0 %v341
    %1157 = vmatmul.f32.gmra.mxu0 %v1140
    %v1158 = vpop.f32.mrf.mxu0
    %v1159 = vadd.f32 0.0, %v1158
    %1160 = vdwg.mxu0
    %1161 = vmatpush.msra.mxu0 %v387
    %1162 = vmatpush.msra.mxu0 %v384
    %1163 = vmatpush.msra.mxu0 %v381
    %1164 = vmatpush.msra.mxu0 %v378
    %1165 = vmatpush.msra.mxu0 %v375
    %1166 = vmatpush.msra.mxu0 %v372
    %1167 = vmatpush.msra.mxu0 %v369
    %1168 = vmatpush.msra.mxu0 %v366
    %1169 = vmatpush.msra.mxu0 %v363
    %1170 = vmatpush.msra.mxu0 %v360
    %1171 = vmatpush.msra.mxu0 %v357
    %1172 = vmatpush.msra.mxu0 %v354
    %1173 = vmatpush.msra.mxu0 %v351
    %1174 = vmatpush.msra.mxu0 %v348
    %1175 = vmatpush.msra.mxu0 %v345
    %1176 = vmatpush.msra.mxu0 %v342
    %1177 = vmatmul.f32.gmra.mxu0 %v1140
    %v1178 = vpop.f32.mrf.mxu0
    %v1179 = vadd.f32 0.0, %v1178
    %1180 = vdwg.mxu0
    %1181 = vmatpush.msra.mxu0 %v388
    %1182 = vmatpush.msra.mxu0 %v385
    %1183 = vmatpush.msra.mxu0 %v382
    %1184 = vmatpush.msra.mxu0 %v379
    %1185 = vmatpush.msra.mxu0 %v376
    %1186 = vmatpush.msra.mxu0 %v373
    %1187 = vmatpush.msra.mxu0 %v370
    %1188 = vmatpush.msra.mxu0 %v367
    %1189 = vmatpush.msra.mxu0 %v364
    %1190 = vmatpush.msra.mxu0 %v361
    %1191 = vmatpush.msra.mxu0 %v358
    %1192 = vmatpush.msra.mxu0 %v355
    %1193 = vmatpush.msra.mxu0 %v352
    %1194 = vmatpush.msra.mxu0 %v349
    %1195 = vmatpush.msra.mxu0 %v346
    %1196 = vmatpush.msra.mxu0 %v343
    %1197 = vmatmul.f32.gmra.mxu0 %v1140
    %v1198 = vpop.f32.mrf.mxu0
    %v1199 = vadd.f32 0.0, %v1198
    %1200 = vdwg.mxu0
    %v1201 = vadd.f32 %v257, %v1159
    %v1202 = vxor.u32 %v1201, 2147483648
    %v1203 = vmul.f32 %v1202, 1.442695
    %v1204 = vpow.pop %v1203
    %v1205 = vadd.f32 %v1204, 1.0
    %v1206 = vrcp.pop %v1205
    %v1207 = vmul.f32 %v1205, %v1206
    %v1208 = vsub.f32 1.0, %v1207
    %v1209 = vmul.f32 %v1206, %v1208
    %v1210 = vadd.f32 %v1206, %v1209
    %vm1211 = vweird.f32 %v1205
    %vm1212 = vweird.f32 %v1206
    %vm1213 = vmor %vm1211, %vm1212
    %v1214 = vsel %vm1213, %v1206, %v1210
    %v1215 = vand.u32 2147483647, %v1205
    %vm1216 = vcmp.eq.f32.partialorder %v1215, 8.507059e+37
    %v1217 = vand.u32 %v1205, 2147483648
    %v1218 = vor.u32 1.1754944e-38, %v1217
    %v1219 = vsel %vm1216, %v1218, %v1214
    %v1220 = vmul.f32 1.0, %v1219
    %v1221 = vadd.f32 %v298, %v1179
    %v1222 = vxor.u32 %v1221, 2147483648
    %v1223 = vmul.f32 %v1222, 1.442695
    %v1224 = vpow.pop %v1223
    %v1225 = vadd.f32 %v1224, 1.0
    %v1226 = vrcp.pop %v1225
    %v1227 = vmul.f32 %v1225, %v1226
    %v1228 = vsub.f32 1.0, %v1227
    %v1229 = vmul.f32 %v1226, %v1228
    %v1230 = vadd.f32 %v1226, %v1229
    %vm1231 = vweird.f32 %v1225
    %vm1232 = vweird.f32 %v1226
    %vm1233 = vmor %vm1231, %vm1232
    %v1234 = vsel %vm1233, %v1226, %v1230
    %v1235 = vand.u32 2147483647, %v1225
    %vm1236 = vcmp.eq.f32.partialorder %v1235, 8.507059e+37
    %v1237 = vand.u32 %v1225, 2147483648
    %v1238 = vor.u32 1.1754944e-38, %v1237
    %v1239 = vsel %vm1236, %v1238, %v1234
    %v1240 = vmul.f32 1.0, %v1239
    %v1241 = vadd.f32 %v1199, %v390
    %v1242 = vmul.f32 %v1220, %v1241
    %v1243 = vadd.f32 %v339, %v1242
    %v1244 = vtanh.pop %v1243
    %v1245 = vsub.f32 %v1140, %v1244
    %v1246 = vmul.f32 %v1240, %v1245
    %v1247 = vadd.f32 %v1244, %v1246
    %1248 = vst [vmem:[%s9] sm:$0xff] %v1247
    %v1249 = vld [vmem:[%s6] sm:$0xff]
    %v1250 = vld [vmem:[%s6 + $0x8] sm:$0xff]
    %v1251 = vld [vmem:[%s6 + $0x10] sm:$0xff]
    %v1252 = vld [vmem:[%s6 + $0x18] sm:$0xff]
    %v1253 = vld [vmem:[%s6 + $0x20] sm:$0xff]
    %v1254 = vld [vmem:[%s6 + $0x28] sm:$0xff]
    %v1255 = vld [vmem:[%s6 + $0x30] sm:$0xff]
    %v1256 = vld [vmem:[%s6 + $0x38] sm:$0xff]
    %v1257 = vld [vmem:[%s6 + $0x40] sm:$0xff]
    %v1258 = vld [vmem:[%s6 + $0x48] sm:$0xff]
    %v1259 = vld [vmem:[%s6 + $0x50] sm:$0xff]
    %v1260 = vld [vmem:[%s6 + $0x58] sm:$0xff]
    %v1261 = vld [vmem:[%s6 + $0x60] sm:$0xff]
    %v1262 = vld [vmem:[%s6 + $0x68] sm:$0xff]
    %v1263 = vld [vmem:[%s6 + $0x70] sm:$0xff]
    %v1264 = vld [vmem:[%s6 + $0x78] sm:$0xff]
    %v1265 = vld [vmem:[%s7] sm:$0x1]
    %v1267 = vperm.slane %v1265, 0
    %1269 = vmatpush.msra.mxu0 %v1264
    %1270 = vmatpush.msra.mxu0 %v1263
    %1271 = vmatpush.msra.mxu0 %v1262
    %1272 = vmatpush.msra.mxu0 %v1261
    %1273 = vmatpush.msra.mxu0 %v1260
    %1274 = vmatpush.msra.mxu0 %v1259
    %1275 = vmatpush.msra.mxu0 %v1258
    %1276 = vmatpush.msra.mxu0 %v1257
    %1277 = vmatpush.msra.mxu0 %v1256
    %1278 = vmatpush.msra.mxu0 %v1255
    %1279 = vmatpush.msra.mxu0 %v1254
    %1280 = vmatpush.msra.mxu0 %v1253
    %1281 = vmatpush.msra.mxu0 %v1252
    %1282 = vmatpush.msra.mxu0 %v1251
    %1283 = vmatpush.msra.mxu0 %v1250
    %1284 = vmatpush.msra.mxu0 %v1249
    %1285 = vmatmul.f32.gmra.mxu0 %v498
    %v1286 = vpop.f32.mrf.mxu0
    %v1287 = vadd.f32 %v1267, %v1286
    %1288 = vmatmul.f32.gmra.mxu0 %v605
    %v1289 = vpop.f32.mrf.mxu0
    %v1290 = vadd.f32 %v1267, %v1289
    %1291 = vmatmul.f32.gmra.mxu0 %v712
    %v1292 = vpop.f32.mrf.mxu0
    %v1293 = vadd.f32 %v1267, %v1292
    %1294 = vmatmul.f32.gmra.mxu0 %v819
    %v1295 = vpop.f32.mrf.mxu0
    %v1296 = vadd.f32 %v1267, %v1295
    %1297 = vmatmul.f32.gmra.mxu0 %v926
    %v1298 = vpop.f32.mrf.mxu0
    %v1299 = vadd.f32 %v1267, %v1298
    %1300 = vmatmul.f32.gmra.mxu0 %v1033
    %v1301 = vpop.f32.mrf.mxu0
    %v1302 = vadd.f32 %v1267, %v1301
    %1303 = vmatmul.f32.gmra.mxu0 %v1140
    %v1304 = vpop.f32.mrf.mxu0
    %v1305 = vadd.f32 %v1267, %v1304
    %1306 = vmatmul.f32.gmra.mxu0 %v1247
    %v1307 = vpop.f32.mrf.mxu0
    %v1308 = vadd.f32 %v1267, %v1307
    %1309 = vdwg.mxu0
    %1310 = vst.msk [vmem:[%s8] sm:$0xff] %vm107, %v1287
    %1311 = vst.msk [vmem:[%s8 + $0x8] sm:$0xff] %vm107, %v1290
    %1312 = vst.msk [vmem:[%s8 + $0x10] sm:$0xff] %vm107, %v1293
    %1313 = vst.msk [vmem:[%s8 + $0x18] sm:$0xff] %vm107, %v1296
    %1314 = vst.msk [vmem:[%s8 + $0x20] sm:$0xff] %vm107, %v1299
    %1315 = vst.msk [vmem:[%s8 + $0x28] sm:$0xff] %vm107, %v1302
    %1316 = vst.msk [vmem:[%s8 + $0x30] sm:$0xff] %vm107, %v1305
    %1317 = vst.msk [vmem:[%s8 + $0x38] sm:$0xff] %vm107, %v1308
    // Predicated region
    $region38: #{translate_decoder_forward.1} parent=1 // pred_check
      _
    $region39: #{translate_decoder_forward.1} parent=1 // pred_check_branch
      %1319 = sbr.rel (0) target = $region41
    $region40: #{translate_decoder_forward.1} parent=1 // pred_region
      _
    $region41: #{translate_decoder_forward.1} parent=1 // pred_fallthru
      _
    // Predicated region
    $region42: #{translate_decoder_forward.1} parent=1 // pred_check
      _
    $region43: #{translate_decoder_forward.1} parent=1 // pred_check_branch
      %1321 = sbr.rel (0) target = $region45
    $region44: #{translate_decoder_forward.1} parent=1 // pred_region
      _
    $region45: #{translate_decoder_forward.1} parent=1 // pred_fallthru
      _
    // Predicated region
    $region46: #{translate_decoder_forward.1} parent=1 // pred_check
      _
    $region47: #{translate_decoder_forward.1} parent=1 // pred_check_branch
      %1323 = sbr.rel (0) target = $region49
    $region48: #{translate_decoder_forward.1} parent=1 // pred_region
      _
    $region49: #{translate_decoder_forward.1} parent=1 // pred_fallthru
      _
    // Predicated region
    $region50: #{translate_decoder_forward.1} parent=1 // pred_check
      _
    $region51: #{translate_decoder_forward.1} parent=1 // pred_check_branch
      %1325 = sbr.rel (0) target = $region53
    $region52: #{translate_decoder_forward.1} parent=1 // pred_region
      _
    $region53: #{translate_decoder_forward.1} parent=1 // pred_fallthru
      _
    %1326 = vsyncpa [#allocation3], 1

</llo_original>
